<compile_context>
chip_gen: v7x
topology: tpu7x:2x2x1
jax: 0.10.0
libtpu: 0.0.40
codegen_flags: <defaults>
</compile_context>

<pallas_src>
import functools

import jax
import jax.numpy as jnp
from jax import lax
from jax.experimental import pallas as pl
from jax.experimental.pallas import tpu as pltpu

# ----------------------------- small config ---------------------------------
HIDDEN = 32
NUM_HEADS = 2
QK_NOPE = 16
QK_ROPE = 8
V_HEAD = 16
Q_LORA = 16
KV_LORA = 16
INTERMEDIATE = 64
RMS_EPS = 1e-6
ROPE_THETA = 10000.0
SEQ = 8
QK_HEAD = QK_NOPE + QK_ROPE           # 24
ATTN_SCALE = QK_HEAD ** -0.5          # rope_scaling=None -> plain 1/sqrt(d)


# --------------------------- fused layer kernel ------------------------------
def _decoder_layer_kernel(
    eps, scale, num_heads, has_residual,
    # inputs
    x_ref, r_ref, cos_ref, sin_ref, swap_ref,
    in_ln_ref, qa_w_ref, qa_ln_ref, qb_nope_ref, qb_pe_ref,
    kva_w_ref, kva_ln_ref, kpe_w_ref, kvb_nope_ref, kvb_v_ref,
    o_w_ref, post_ln_ref, gate_w_ref, up_w_ref, down_w_ref,
    # outputs
    out_ref, res_ref,
):
    f32 = jnp.float32
    bf16 = jnp.bfloat16

    def rms(v, w_ref_):
        var = jnp.mean(v * v, axis=-1, keepdims=True)
        return v * lax.rsqrt(var + eps) * w_ref_[...].astype(f32)

    def mm(a, w):                      # bf16 MXU matmul, f32 accumulation
        return jnp.dot(a.astype(bf16), w.astype(bf16),
                       preferred_element_type=f32)

    def mm_nt(a, b):                   # a @ b.T without materializing b.T
        return lax.dot_general(a.astype(bf16), b.astype(bf16),
                               (((1,), (1,)), ((), ())),
                               preferred_element_type=f32)

    x = x_ref[...].astype(f32)
    if has_residual:
        res = x + r_ref[...].astype(f32)
    else:
        res = x
    h = rms(res, in_ln_ref)                                   # input RMSNorm

    # ---- MLA low-rank projections ----
    q_a = rms(mm(h, qa_w_ref[...]), qa_ln_ref)                # (S, q_lora)
    kv_a = rms(mm(h, kva_w_ref[...]), kva_ln_ref)             # (S, kv_lora)
    k_pe = mm(h, kpe_w_ref[...])                              # (S, qk_rope)

    # ---- interleaved (non-neox) rotary embedding:  x*cos + swap(x)*(+-sin) ----
    cos = cos_ref[...]
    sin = sin_ref[...]
    swap = swap_ref[...]

    def rope(v):
        return v * cos + jnp.dot(v, swap, preferred_element_type=f32) * sin

    k_pe = rope(k_pe)

    # ---- per-head causal attention; o_proj folded into the head loop ----
    seq = x.shape[0]
    row = lax.broadcasted_iota(jnp.int32, (seq, seq), 0)
    col = lax.broadcasted_iota(jnp.int32, (seq, seq), 1)
    causal = col <= row

    attn = jnp.zeros_like(x)                                  # (S, hidden)
    for hd in range(num_heads):                               # static unroll (H=2)
        q_nope = mm(q_a, qb_nope_ref[hd])                     # (S, qk_nope)
        q_pe = rope(mm(q_a, qb_pe_ref[hd]))                   # (S, qk_rope)
        k_nope = mm(kv_a, kvb_nope_ref[hd])                   # (S, qk_nope)
        v_h = mm(kv_a, kvb_v_ref[hd])                         # (S, v_head)

        s = (mm_nt(q_nope, k_nope) + mm_nt(q_pe, k_pe)) * scale
        s = jnp.where(causal, s, -jnp.inf)                    # causal prefill mask
        m = jnp.max(s, axis=-1, keepdims=True)
        p = jnp.exp(s - m)
        p = p * pl.reciprocal(jnp.sum(p, axis=-1, keepdims=True), approx=True)

        o_h = mm(p, v_h)                                      # (S, v_head)
        attn = attn + mm(o_h, o_w_ref[hd])                    # (S, hidden)

    # ---- post-attention residual add + RMSNorm ----
    res2 = attn + res
    res_ref[...] = res2.astype(res_ref.dtype)
    h2 = rms(res2, post_ln_ref)

    # ---- dense MLP:  down( silu(gate) * up ) ----
    gate = mm(h2, gate_w_ref[...])                            # (S, inter)
    up = mm(h2, up_w_ref[...])                                # (S, inter)
    act = gate * jax.nn.sigmoid(gate) * up                    # f32 VPU/EUP
    out_ref[...] = mm(act, down_w_ref[...]).astype(out_ref.dtype)


# ------------------------------- wrapper --------------------------------------
def _full_spec(shape):
    n = len(shape)
    return pl.BlockSpec(shape, lambda i, _n=n: (0,) * _n)


def _rope_tables(positions, rotary_dim, theta):
    """cos/sin expanded for interleaved rotation + constant pair-swap matrix."""
    inv_freq = 1.0 / (theta ** (jnp.arange(0, rotary_dim, 2, dtype=jnp.float32)
                                / rotary_dim))
    freqs = positions.astype(jnp.float32)[:, None] * inv_freq[None, :]     # (S, d/2)
    sign = jnp.tile(jnp.array([-1.0, 1.0], jnp.float32), rotary_dim // 2)  # (d,)
    cos_e = jnp.repeat(jnp.cos(freqs), 2, axis=-1)                         # (S, d)
    sin_e = jnp.repeat(jnp.sin(freqs), 2, axis=-1) * sign[None, :]         # (S, d)
    idx = jnp.arange(rotary_dim, dtype=jnp.int32)
    swap = (idx[:, None] == (idx[None, :] ^ 1)).astype(jnp.float32)        # (d, d)
    return cos_e, sin_e, swap


def deepseek_decoder_layer(positions, hidden_states, params, residual=None):
    """Fused DeepseekDecoderLayer forward. Returns (hidden_states, residual)."""
    S, D = hidden_states.shape
    has_residual = residual is not None
    r_in = residual if has_residual else hidden_states
    cos_e, sin_e, swap = _rope_tables(positions, QK_ROPE, ROPE_THETA)
    p = params

    inputs = (hidden_states, r_in, cos_e, sin_e, swap,
              p["input_ln_w"], p["q_a_w"], p["q_a_ln_w"], p["q_b_nope"], p["q_b_pe"],
              p["kv_a_w"], p["kv_a_ln_w"], p["k_pe_w"], p["kv_b_nope"], p["kv_b_v"],
              p["o_w"], p["post_ln_w"], p["gate_w"], p["up_w"], p["down_w"])

    kernel = functools.partial(_decoder_layer_kernel, RMS_EPS, ATTN_SCALE,
                               NUM_HEADS, has_residual)
    out, new_res = pl.pallas_call(
        kernel,
        grid=(1,),
        in_specs=[_full_spec(a.shape) for a in inputs],
        out_specs=[_full_spec((S, D)), _full_spec((S, D))],
        out_shape=[jax.ShapeDtypeStruct((S, D), hidden_states.dtype),
                   jax.ShapeDtypeStruct((S, D), hidden_states.dtype)],
        compiler_params=pltpu.CompilerParams(dimension_semantics=("arbitrary",)),
    )(*inputs)
    return out, new_res


# ------------------------------ params ---------------------------------------
def init_params(key):
    """Raw weights in the torch module layout (stored (in, out) for x @ w)."""
    ks = jax.random.split(key, 16)
    n = iter(range(16))
    std = 0.05

    def w(k, shape):
        return jax.random.normal(k, shape, jnp.float32) * std

    return {
        "q_a_proj":  w(ks[next(n)], (HIDDEN, Q_LORA)),
        "q_a_ln_w":  jnp.ones((Q_LORA,), jnp.float32),
        "q_b_proj":  w(ks[next(n)], (Q_LORA, NUM_HEADS * QK_HEAD)),
        "kv_a_proj": w(ks[next(n)], (HIDDEN, KV_LORA + QK_ROPE)),
        "kv_a_ln_w": jnp.ones((KV_LORA,), jnp.float32),
        "kv_b_proj": w(ks[next(n)], (KV_LORA, NUM_HEADS * (QK_NOPE + V_HEAD))),
        "o_proj":    w(ks[next(n)], (NUM_HEADS * V_HEAD, HIDDEN)),
        "input_ln_w": jnp.ones((HIDDEN,), jnp.float32),
        "post_ln_w":  jnp.ones((HIDDEN,), jnp.float32),
        "gate_up_w": w(ks[next(n)], (HIDDEN, 2 * INTERMEDIATE)),
        "down_w":    w(ks[next(n)], (INTERMEDIATE, HIDDEN)),
    }


def prepare_params(raw):
    """One-time layout prep for the fused kernel: split merged projections
    per head / per purpose (exact math), cast matmul weights to bf16."""
    bf = lambda a: a.astype(jnp.bfloat16)

    qb = raw["q_b_proj"].reshape(Q_LORA, NUM_HEADS, QK_HEAD)
    kvb = raw["kv_b_proj"].reshape(KV_LORA, NUM_HEADS, QK_NOPE + V_HEAD)
    ow = raw["o_proj"].reshape(NUM_HEADS, V_HEAD, HIDDEN)

    return {
        "input_ln_w": raw["input_ln_w"].reshape(1, HIDDEN),
        "post_ln_w":  raw["post_ln_w"].reshape(1, HIDDEN),
        "q_a_w":      bf(raw["q_a_proj"]),
        "q_a_ln_w":   raw["q_a_ln_w"].reshape(1, Q_LORA),
        "q_b_nope":   bf(jnp.transpose(qb[..., :QK_NOPE], (1, 0, 2))),   # (H, r, dn)
        "q_b_pe":     bf(jnp.transpose(qb[..., QK_NOPE:], (1, 0, 2))),   # (H, r, dr)
        "kv_a_w":     bf(raw["kv_a_proj"][:, :KV_LORA]),
        "k_pe_w":     bf(raw["kv_a_proj"][:, KV_LORA:]),
        "kv_a_ln_w":  raw["kv_a_ln_w"].reshape(1, KV_LORA),
        "kv_b_nope":  bf(jnp.transpose(kvb[..., :QK_NOPE], (1, 0, 2))),  # (H, r, dn)
        "kv_b_v":     bf(jnp.transpose(kvb[..., QK_NOPE:], (1, 0, 2))),  # (H, r, dv)
        "o_w":        bf(ow),                                            # (H, dv, hid)
        "gate_w":     bf(raw["gate_up_w"][:, :INTERMEDIATE]),
        "up_w":       bf(raw["gate_up_w"][:, INTERMEDIATE:]),
        "down_w":     bf(raw["down_w"]),
    }


# --------------------------- pure-JAX reference -------------------------------
def _reference_layer(positions, x, raw, residual=None):
    def rms(v, w):
        var = jnp.mean(v * v, axis=-1, keepdims=True)
        return v * lax.rsqrt(var + RMS_EPS) * w

    res = x if residual is None else x + residual
    h = rms(res, raw["input_ln_w"])
    S = x.shape[0]

    q_a = rms(h @ raw["q_a_proj"], raw["q_a_ln_w"])
    q = (q_a @ raw["q_b_proj"]).reshape(S, NUM_HEADS, QK_HEAD)
    q_nope, q_pe = q[..., :QK_NOPE], q[..., QK_NOPE:]
    latent = h @ raw["kv_a_proj"]
    kv_a, k_pe = latent[:, :KV_LORA], latent[:, KV_LORA:]
    kv_a = rms(kv_a, raw["kv_a_ln_w"])
    kv = (kv_a @ raw["kv_b_proj"]).reshape(S, NUM_HEADS, QK_NOPE + V_HEAD)
    k_nope, v = kv[..., :QK_NOPE], kv[..., QK_NOPE:]

    inv_freq = 1.0 / (ROPE_THETA ** (jnp.arange(0, QK_ROPE, 2, dtype=jnp.float32)
                                     / QK_ROPE))
    fr = positions.astype(jnp.float32)[:, None] * inv_freq[None, :]
    cos = jnp.cos(fr)[:, None, :]
    sin = jnp.sin(fr)[:, None, :]

    def rot(t):  # interleaved (non-neox) pairs
        t1, t2 = t[..., 0::2], t[..., 1::2]
        return jnp.stack([t1 * cos - t2 * sin, t2 * cos + t1 * sin],
                         axis=-1).reshape(t.shape)

    q_pe = rot(q_pe)
    k_pe = jnp.broadcast_to(rot(k_pe[:, None, :]), (S, NUM_HEADS, QK_ROPE))
    qf = jnp.concatenate([q_nope, q_pe], -1)
    kf = jnp.concatenate([k_nope, k_pe], -1)

    s = jnp.einsum("qhd,khd->hqk", qf, kf) * ATTN_SCALE
    mask = jnp.tril(jnp.ones((S, S), bool))
    s = jnp.where(mask[None], s, -jnp.inf)
    p = jax.nn.softmax(s, axis=-1)
    o = jnp.einsum("hqk,khd->qhd", p, v).reshape(S, NUM_HEADS * V_HEAD)
    attn = o @ raw["o_proj"]

    res2 = attn + res
    h2 = rms(res2, raw["post_ln_w"])
    gu = h2 @ raw["gate_up_w"]
    g, u = gu[:, :INTERMEDIATE], gu[:, INTERMEDIATE:]
    out = (g * jax.nn.sigmoid(g) * u) @ raw["down_w"]
    return out, res2


# ------------------------------- main -----------------------------------------
if __name__ == "__main__":
    key = jax.random.PRNGKey(0)
    pkey, xkey = jax.random.split(key)
    raw = init_params(pkey)
    params = prepare_params(raw)

    positions = jnp.arange(SEQ, dtype=jnp.int32)
    hidden_states = jax.random.normal(xkey, (SEQ, HIDDEN), jnp.float32)

    layer = jax.jit(deepseek_decoder_layer)
    out, residual = layer(positions, hidden_states, params)
    jax.block_until_ready((out, residual))

    ref_out, ref_res = _reference_layer(positions, hidden_states, raw)

    assert out.shape == (SEQ, HIDDEN) and residual.shape == (SEQ, HIDDEN)
    assert bool(jnp.all(jnp.isfinite(out))) and bool(jnp.all(jnp.isfinite(residual)))
    assert bool(jnp.allclose(out, ref_out, atol=2e-2, rtol=2e-2)), \
        float(jnp.max(jnp.abs(out - ref_out)))
    assert bool(jnp.allclose(residual, ref_res, atol=2e-2, rtol=2e-2)), \
        float(jnp.max(jnp.abs(residual - ref_res)))
    print("KERNEL_OK")
</pallas_src>

<mosaic_0001>
module attributes {stable_mosaic.version = 11 : i64} {
  func.func @_decoder_layer_kernel(%arg0: i32, %arg1: memref<8x32xf32, #tpu.memory_space<vmem>>, %arg2: memref<8x32xf32, #tpu.memory_space<vmem>>, %arg3: memref<8x8xf32, #tpu.memory_space<vmem>>, %arg4: memref<8x8xf32, #tpu.memory_space<vmem>>, %arg5: memref<8x8xf32, #tpu.memory_space<vmem>>, %arg6: memref<1x32xf32, #tpu.memory_space<vmem>>, %arg7: memref<32x16xbf16, #tpu.memory_space<vmem>>, %arg8: memref<1x16xf32, #tpu.memory_space<vmem>>, %arg9: memref<2x16x16xbf16, #tpu.memory_space<vmem>>, %arg10: memref<2x16x8xbf16, #tpu.memory_space<vmem>>, %arg11: memref<32x16xbf16, #tpu.memory_space<vmem>>, %arg12: memref<1x16xf32, #tpu.memory_space<vmem>>, %arg13: memref<32x8xbf16, #tpu.memory_space<vmem>>, %arg14: memref<2x16x16xbf16, #tpu.memory_space<vmem>>, %arg15: memref<2x16x16xbf16, #tpu.memory_space<vmem>>, %arg16: memref<2x16x32xbf16, #tpu.memory_space<vmem>>, %arg17: memref<1x32xf32, #tpu.memory_space<vmem>>, %arg18: memref<32x64xbf16, #tpu.memory_space<vmem>>, %arg19: memref<32x64xbf16, #tpu.memory_space<vmem>>, %arg20: memref<64x32xbf16, #tpu.memory_space<vmem>>, %arg21: memref<8x32xf32, #tpu.memory_space<vmem>>, %arg22: memref<8x32xf32, #tpu.memory_space<vmem>>) attributes {dimension_semantics = [#tpu.dimension_semantics<arbitrary>], iteration_bounds = array<i64: 1>, scalar_prefetch = 0 : i64, scratch_operands = 0 : i64, tpu.core_type = #tpu.core_type<tc>, window_params = [{pipeline_mode = #tpu.pipeline_mode<synchronous>, transform_indices = @transform_0, window_bounds = array<i64: 8, 32>}, {pipeline_mode = #tpu.pipeline_mode<synchronous>, transform_indices = @transform_1, window_bounds = array<i64: 8, 32>}, {pipeline_mode = #tpu.pipeline_mode<synchronous>, transform_indices = @transform_2, window_bounds = array<i64: 8, 8>}, {pipeline_mode = #tpu.pipeline_mode<synchronous>, transform_indices = @transform_3, window_bounds = array<i64: 8, 8>}, {pipeline_mode = #tpu.pipeline_mode<synchronous>, transform_indices = @transform_4, window_bounds = array<i64: 8, 8>}, {pipeline_mode = #tpu.pipeline_mode<synchronous>, transform_indices = @transform_5, window_bounds = array<i64: 1, 32>}, {pipeline_mode = #tpu.pipeline_mode<synchronous>, transform_indices = @transform_6, window_bounds = array<i64: 32, 16>}, {pipeline_mode = #tpu.pipeline_mode<synchronous>, transform_indices = @transform_7, window_bounds = array<i64: 1, 16>}, {pipeline_mode = #tpu.pipeline_mode<synchronous>, transform_indices = @transform_8, window_bounds = array<i64: 2, 16, 16>}, {pipeline_mode = #tpu.pipeline_mode<synchronous>, transform_indices = @transform_9, window_bounds = array<i64: 2, 16, 8>}, {pipeline_mode = #tpu.pipeline_mode<synchronous>, transform_indices = @transform_10, window_bounds = array<i64: 32, 16>}, {pipeline_mode = #tpu.pipeline_mode<synchronous>, transform_indices = @transform_11, window_bounds = array<i64: 1, 16>}, {pipeline_mode = #tpu.pipeline_mode<synchronous>, transform_indices = @transform_12, window_bounds = array<i64: 32, 8>}, {pipeline_mode = #tpu.pipeline_mode<synchronous>, transform_indices = @transform_13, window_bounds = array<i64: 2, 16, 16>}, {pipeline_mode = #tpu.pipeline_mode<synchronous>, transform_indices = @transform_14, window_bounds = array<i64: 2, 16, 16>}, {pipeline_mode = #tpu.pipeline_mode<synchronous>, transform_indices = @transform_15, window_bounds = array<i64: 2, 16, 32>}, {pipeline_mode = #tpu.pipeline_mode<synchronous>, transform_indices = @transform_16, window_bounds = array<i64: 1, 32>}, {pipeline_mode = #tpu.pipeline_mode<synchronous>, transform_indices = @transform_17, window_bounds = array<i64: 32, 64>}, {pipeline_mode = #tpu.pipeline_mode<synchronous>, transform_indices = @transform_18, window_bounds = array<i64: 32, 64>}, {pipeline_mode = #tpu.pipeline_mode<synchronous>, transform_indices = @transform_19, window_bounds = array<i64: 64, 32>}, {pipeline_mode = #tpu.pipeline_mode<synchronous>, transform_indices = @transform_20, window_bounds = array<i64: 8, 32>}, {pipeline_mode = #tpu.pipeline_mode<synchronous>, transform_indices = @transform_21, window_bounds = array<i64: 8, 32>}]} {
    %c0 = arith.constant 0 : index
    %c0_0 = arith.constant 0 : index
    %0 = vector.load %arg1[%c0, %c0_0] : memref<8x32xf32, #tpu.memory_space<vmem>>, vector<8x32xf32>
    %1 = arith.mulf %0, %0 : vector<8x32xf32>
    %cst = arith.constant dense<0.000000e+00> : vector<8xf32>
    %2 = vector.multi_reduction <add>, %1, %cst [1] : vector<8x32xf32> to vector<8xf32>
    %3 = vector.shape_cast %2 : vector<8xf32> to vector<8x1xf32>
    %cst_1 = arith.constant 3.200000e+01 : f32
    %4 = vector.broadcast %cst_1 : f32 to vector<8x1xf32>
    %5 = arith.divf %3, %4 : vector<8x1xf32>
    %cst_2 = arith.constant 9.99999997E-7 : f32
    %6 = vector.broadcast %cst_2 : f32 to vector<8x1xf32>
    %7 = arith.addf %5, %6 : vector<8x1xf32>
    %8 = math.rsqrt %7 : vector<8x1xf32>
    %9 = vector.broadcast %8 : vector<8x1xf32> to vector<8x32xf32>
    %10 = arith.mulf %0, %9 : vector<8x32xf32>
    %c0_3 = arith.constant 0 : index
    %c0_4 = arith.constant 0 : index
    %11 = vector.load %arg6[%c0_3, %c0_4] : memref<1x32xf32, #tpu.memory_space<vmem>>, vector<1x32xf32>
    %12 = vector.broadcast %11 : vector<1x32xf32> to vector<8x32xf32>
    %13 = arith.mulf %10, %12 : vector<8x32xf32>
    %c0_5 = arith.constant 0 : index
    %c0_6 = arith.constant 0 : index
    %14 = vector.load %arg7[%c0_5, %c0_6] : memref<32x16xbf16, #tpu.memory_space<vmem>>, vector<32x16xbf16>
    %15 = arith.truncf %13 : vector<8x32xf32> to vector<8x32xbf16>
    %cst_7 = arith.constant dense<0.000000e+00> : vector<8x16xf32>
    %16 = tpu.matmul %15, %14, %cst_7 {dimension_numbers = #tpu.dot_dimension_numbers<[1], [0], [0], [1], [0, 0, 1, 1], [], []>} : vector<8x32xbf16>, vector<32x16xbf16>, vector<8x16xf32> -> vector<8x16xf32>
    %17 = arith.mulf %16, %16 : vector<8x16xf32>
    %cst_8 = arith.constant dense<0.000000e+00> : vector<8xf32>
    %18 = vector.multi_reduction <add>, %17, %cst_8 [1] : vector<8x16xf32> to vector<8xf32>
    %19 = vector.shape_cast %18 : vector<8xf32> to vector<8x1xf32>
    %cst_9 = arith.constant 1.600000e+01 : f32
    %20 = vector.broadcast %cst_9 : f32 to vector<8x1xf32>
    %21 = arith.divf %19, %20 : vector<8x1xf32>
    %cst_10 = arith.constant 9.99999997E-7 : f32
    %22 = vector.broadcast %cst_10 : f32 to vector<8x1xf32>
    %23 = arith.addf %21, %22 : vector<8x1xf32>
    %24 = math.rsqrt %23 : vector<8x1xf32>
    %25 = vector.broadcast %24 : vector<8x1xf32> to vector<8x16xf32>
    %26 = arith.mulf %16, %25 : vector<8x16xf32>
    %c0_11 = arith.constant 0 : index
    %c0_12 = arith.constant 0 : index
    %27 = vector.load %arg8[%c0_11, %c0_12] : memref<1x16xf32, #tpu.memory_space<vmem>>, vector<1x16xf32>
    %28 = vector.broadcast %27 : vector<1x16xf32> to vector<8x16xf32>
    %29 = arith.mulf %26, %28 : vector<8x16xf32>
    %c0_13 = arith.constant 0 : index
    %c0_14 = arith.constant 0 : index
    %30 = vector.load %arg11[%c0_13, %c0_14] : memref<32x16xbf16, #tpu.memory_space<vmem>>, vector<32x16xbf16>
    %31 = arith.truncf %13 : vector<8x32xf32> to vector<8x32xbf16>
    %cst_15 = arith.constant dense<0.000000e+00> : vector<8x16xf32>
    %32 = tpu.matmul %31, %30, %cst_15 {dimension_numbers = #tpu.dot_dimension_numbers<[1], [0], [0], [1], [0, 0, 1, 1], [], []>} : vector<8x32xbf16>, vector<32x16xbf16>, vector<8x16xf32> -> vector<8x16xf32>
    %33 = arith.mulf %32, %32 : vector<8x16xf32>
    %cst_16 = arith.constant dense<0.000000e+00> : vector<8xf32>
    %34 = vector.multi_reduction <add>, %33, %cst_16 [1] : vector<8x16xf32> to vector<8xf32>
    %35 = vector.shape_cast %34 : vector<8xf32> to vector<8x1xf32>
    %cst_17 = arith.constant 1.600000e+01 : f32
    %36 = vector.broadcast %cst_17 : f32 to vector<8x1xf32>
    %37 = arith.divf %35, %36 : vector<8x1xf32>
    %cst_18 = arith.constant 9.99999997E-7 : f32
    %38 = vector.broadcast %cst_18 : f32 to vector<8x1xf32>
    %39 = arith.addf %37, %38 : vector<8x1xf32>
    %40 = math.rsqrt %39 : vector<8x1xf32>
    %41 = vector.broadcast %40 : vector<8x1xf32> to vector<8x16xf32>
    %42 = arith.mulf %32, %41 : vector<8x16xf32>
    %c0_19 = arith.constant 0 : index
    %c0_20 = arith.constant 0 : index
    %43 = vector.load %arg12[%c0_19, %c0_20] : memref<1x16xf32, #tpu.memory_space<vmem>>, vector<1x16xf32>
    %44 = vector.broadcast %43 : vector<1x16xf32> to vector<8x16xf32>
    %45 = arith.mulf %42, %44 : vector<8x16xf32>
    %c0_21 = arith.constant 0 : index
    %c0_22 = arith.constant 0 : index
    %46 = vector.load %arg13[%c0_21, %c0_22] : memref<32x8xbf16, #tpu.memory_space<vmem>>, vector<32x8xbf16>
    %47 = arith.truncf %13 : vector<8x32xf32> to vector<8x32xbf16>
    %cst_23 = arith.constant dense<0.000000e+00> : vector<8x8xf32>
    %48 = tpu.matmul %47, %46, %cst_23 {dimension_numbers = #tpu.dot_dimension_numbers<[1], [0], [0], [1], [0, 0, 1, 1], [], []>} : vector<8x32xbf16>, vector<32x8xbf16>, vector<8x8xf32> -> vector<8x8xf32>
    %c0_24 = arith.constant 0 : index
    %c0_25 = arith.constant 0 : index
    %49 = vector.load %arg3[%c0_24, %c0_25] : memref<8x8xf32, #tpu.memory_space<vmem>>, vector<8x8xf32>
    %c0_26 = arith.constant 0 : index
    %c0_27 = arith.constant 0 : index
    %50 = vector.load %arg4[%c0_26, %c0_27] : memref<8x8xf32, #tpu.memory_space<vmem>>, vector<8x8xf32>
    %c0_28 = arith.constant 0 : index
    %c0_29 = arith.constant 0 : index
    %51 = vector.load %arg5[%c0_28, %c0_29] : memref<8x8xf32, #tpu.memory_space<vmem>>, vector<8x8xf32>
    %52 = arith.mulf %48, %49 : vector<8x8xf32>
    %cst_30 = arith.constant dense<0.000000e+00> : vector<8x8xf32>
    %53 = tpu.matmul %48, %51, %cst_30 {dimension_numbers = #tpu.dot_dimension_numbers<[1], [0], [0], [1], [0, 0, 1, 1], [], []>} : vector<8x8xf32>, vector<8x8xf32>, vector<8x8xf32> -> vector<8x8xf32>
    %54 = arith.mulf %53, %50 : vector<8x8xf32>
    %55 = arith.addf %52, %54 : vector<8x8xf32>
    %56 = tpu.iota {dimensions = array<i32: 0>} : vector<8x8xi32>
    %57 = tpu.iota {dimensions = array<i32: 1>} : vector<8x8xi32>
    %58 = arith.cmpi sle, %57, %56 : vector<8x8xi32>
    %cst_31 = arith.constant 0.000000e+00 : f32
    %59 = vector.broadcast %cst_31 : f32 to vector<8x32xf32>
    %c0_32 = arith.constant 0 : index
    %c0_33 = arith.constant 0 : index
    %c0_34 = arith.constant 0 : index
    %60 = vector.load %arg9[%c0_32, %c0_33, %c0_34] : memref<2x16x16xbf16, #tpu.memory_space<vmem>>, vector<1x16x16xbf16>
    %61 = vector.shape_cast %60 : vector<1x16x16xbf16> to vector<16x16xbf16>
    %62 = arith.truncf %29 : vector<8x16xf32> to vector<8x16xbf16>
    %cst_35 = arith.constant dense<0.000000e+00> : vector<8x16xf32>
    %63 = tpu.matmul %62, %61, %cst_35 {dimension_numbers = #tpu.dot_dimension_numbers<[1], [0], [0], [1], [0, 0, 1, 1], [], []>} : vector<8x16xbf16>, vector<16x16xbf16>, vector<8x16xf32> -> vector<8x16xf32>
    %c0_36 = arith.constant 0 : index
    %c0_37 = arith.constant 0 : index
    %c0_38 = arith.constant 0 : index
    %64 = vector.load %arg10[%c0_36, %c0_37, %c0_38] : memref<2x16x8xbf16, #tpu.memory_space<vmem>>, vector<1x16x8xbf16>
    %65 = vector.shape_cast %64 : vector<1x16x8xbf16> to vector<16x8xbf16>
    %66 = arith.truncf %29 : vector<8x16xf32> to vector<8x16xbf16>
    %cst_39 = arith.constant dense<0.000000e+00> : vector<8x8xf32>
    %67 = tpu.matmul %66, %65, %cst_39 {dimension_numbers = #tpu.dot_dimension_numbers<[1], [0], [0], [1], [0, 0, 1, 1], [], []>} : vector<8x16xbf16>, vector<16x8xbf16>, vector<8x8xf32> -> vector<8x8xf32>
    %68 = arith.mulf %67, %49 : vector<8x8xf32>
    %cst_40 = arith.constant dense<0.000000e+00> : vector<8x8xf32>
    %69 = tpu.matmul %67, %51, %cst_40 {dimension_numbers = #tpu.dot_dimension_numbers<[1], [0], [0], [1], [0, 0, 1, 1], [], []>} : vector<8x8xf32>, vector<8x8xf32>, vector<8x8xf32> -> vector<8x8xf32>
    %70 = arith.mulf %69, %50 : vector<8x8xf32>
    %71 = arith.addf %68, %70 : vector<8x8xf32>
    %c0_41 = arith.constant 0 : index
    %c0_42 = arith.constant 0 : index
    %c0_43 = arith.constant 0 : index
    %72 = vector.load %arg14[%c0_41, %c0_42, %c0_43] : memref<2x16x16xbf16, #tpu.memory_space<vmem>>, vector<1x16x16xbf16>
    %73 = vector.shape_cast %72 : vector<1x16x16xbf16> to vector<16x16xbf16>
    %74 = arith.truncf %45 : vector<8x16xf32> to vector<8x16xbf16>
    %cst_44 = arith.constant dense<0.000000e+00> : vector<8x16xf32>
    %75 = tpu.matmul %74, %73, %cst_44 {dimension_numbers = #tpu.dot_dimension_numbers<[1], [0], [0], [1], [0, 0, 1, 1], [], []>} : vector<8x16xbf16>, vector<16x16xbf16>, vector<8x16xf32> -> vector<8x16xf32>
    %c0_45 = arith.constant 0 : index
    %c0_46 = arith.constant 0 : index
    %c0_47 = arith.constant 0 : index
    %76 = vector.load %arg15[%c0_45, %c0_46, %c0_47] : memref<2x16x16xbf16, #tpu.memory_space<vmem>>, vector<1x16x16xbf16>
    %77 = vector.shape_cast %76 : vector<1x16x16xbf16> to vector<16x16xbf16>
    %78 = arith.truncf %45 : vector<8x16xf32> to vector<8x16xbf16>
    %cst_48 = arith.constant dense<0.000000e+00> : vector<8x16xf32>
    %79 = tpu.matmul %78, %77, %cst_48 {dimension_numbers = #tpu.dot_dimension_numbers<[1], [0], [0], [1], [0, 0, 1, 1], [], []>} : vector<8x16xbf16>, vector<16x16xbf16>, vector<8x16xf32> -> vector<8x16xf32>
    %80 = arith.truncf %63 : vector<8x16xf32> to vector<8x16xbf16>
    %81 = arith.truncf %75 : vector<8x16xf32> to vector<8x16xbf16>
    %cst_49 = arith.constant dense<0.000000e+00> : vector<8x8xf32>
    %82 = tpu.matmul %80, %81, %cst_49 {dimension_numbers = #tpu.dot_dimension_numbers<[1], [1], [0], [0], [0, 0, 1, 0], [], []>} : vector<8x16xbf16>, vector<8x16xbf16>, vector<8x8xf32> -> vector<8x8xf32>
    %83 = arith.truncf %71 : vector<8x8xf32> to vector<8x8xbf16>
    %84 = arith.truncf %55 : vector<8x8xf32> to vector<8x8xbf16>
    %cst_50 = arith.constant dense<0.000000e+00> : vector<8x8xf32>
    %85 = tpu.matmul %83, %84, %cst_50 {dimension_numbers = #tpu.dot_dimension_numbers<[1], [1], [0], [0], [0, 0, 1, 0], [], []>} : vector<8x8xbf16>, vector<8x8xbf16>, vector<8x8xf32> -> vector<8x8xf32>
    %86 = arith.addf %82, %85 : vector<8x8xf32>
    %cst_51 = arith.constant 0.204124153 : f32
    %87 = vector.broadcast %cst_51 : f32 to vector<8x8xf32>
    %88 = arith.mulf %86, %87 : vector<8x8xf32>
    %cst_52 = arith.constant 0xFF800000 : f32
    %89 = vector.broadcast %cst_52 : f32 to vector<8x8xf32>
    %90 = arith.select %58, %88, %89 : vector<8x8xi1>, vector<8x8xf32>
    %cst_53 = arith.constant dense<0xFF800000> : vector<8xf32>
    %91 = vector.multi_reduction <maximumf>, %90, %cst_53 [1] : vector<8x8xf32> to vector<8xf32>
    %92 = vector.shape_cast %91 : vector<8xf32> to vector<8x1xf32>
    %93 = vector.broadcast %92 : vector<8x1xf32> to vector<8x8xf32>
    %94 = arith.subf %90, %93 : vector<8x8xf32>
    %95 = math.exp %94 : vector<8x8xf32>
    %cst_54 = arith.constant dense<0.000000e+00> : vector<8xf32>
    %96 = vector.multi_reduction <add>, %95, %cst_54 [1] : vector<8x8xf32> to vector<8xf32>
    %97 = vector.shape_cast %96 : vector<8xf32> to vector<8x1xf32>
    %98 = tpu.reciprocal %97 {approx = true} : vector<8x1xf32> -> vector<8x1xf32>
    %99 = vector.broadcast %98 : vector<8x1xf32> to vector<8x8xf32>
    %100 = arith.mulf %95, %99 : vector<8x8xf32>
    %101 = arith.truncf %100 : vector<8x8xf32> to vector<8x8xbf16>
    %102 = arith.truncf %79 : vector<8x16xf32> to vector<8x16xbf16>
    %cst_55 = arith.constant dense<0.000000e+00> : vector<8x16xf32>
    %103 = tpu.matmul %101, %102, %cst_55 {dimension_numbers = #tpu.dot_dimension_numbers<[1], [0], [0], [1], [0, 0, 1, 1], [], []>} : vector<8x8xbf16>, vector<8x16xbf16>, vector<8x16xf32> -> vector<8x16xf32>
    %c0_56 = arith.constant 0 : index
    %c0_57 = arith.constant 0 : index
    %c0_58 = arith.constant 0 : index
    %104 = vector.load %arg16[%c0_56, %c0_57, %c0_58] : memref<2x16x32xbf16, #tpu.memory_space<vmem>>, vector<1x16x32xbf16>
    %105 = vector.shape_cast %104 : vector<1x16x32xbf16> to vector<16x32xbf16>
    %106 = arith.truncf %103 : vector<8x16xf32> to vector<8x16xbf16>
    %cst_59 = arith.constant dense<0.000000e+00> : vector<8x32xf32>
    %107 = tpu.matmul %106, %105, %cst_59 {dimension_numbers = #tpu.dot_dimension_numbers<[1], [0], [0], [1], [0, 0, 1, 1], [], []>} : vector<8x16xbf16>, vector<16x32xbf16>, vector<8x32xf32> -> vector<8x32xf32>
    %108 = arith.addf %59, %107 : vector<8x32xf32>
    %c1 = arith.constant 1 : index
    %c0_60 = arith.constant 0 : index
    %c0_61 = arith.constant 0 : index
    %109 = vector.load %arg9[%c1, %c0_60, %c0_61] : memref<2x16x16xbf16, #tpu.memory_space<vmem>>, vector<1x16x16xbf16>
    %110 = vector.shape_cast %109 : vector<1x16x16xbf16> to vector<16x16xbf16>
    %111 = arith.truncf %29 : vector<8x16xf32> to vector<8x16xbf16>
    %cst_62 = arith.constant dense<0.000000e+00> : vector<8x16xf32>
    %112 = tpu.matmul %111, %110, %cst_62 {dimension_numbers = #tpu.dot_dimension_numbers<[1], [0], [0], [1], [0, 0, 1, 1], [], []>} : vector<8x16xbf16>, vector<16x16xbf16>, vector<8x16xf32> -> vector<8x16xf32>
    %c1_63 = arith.constant 1 : index
    %c0_64 = arith.constant 0 : index
    %c0_65 = arith.constant 0 : index
    %113 = vector.load %arg10[%c1_63, %c0_64, %c0_65] : memref<2x16x8xbf16, #tpu.memory_space<vmem>>, vector<1x16x8xbf16>
    %114 = vector.shape_cast %113 : vector<1x16x8xbf16> to vector<16x8xbf16>
    %115 = arith.truncf %29 : vector<8x16xf32> to vector<8x16xbf16>
    %cst_66 = arith.constant dense<0.000000e+00> : vector<8x8xf32>
    %116 = tpu.matmul %115, %114, %cst_66 {dimension_numbers = #tpu.dot_dimension_numbers<[1], [0], [0], [1], [0, 0, 1, 1], [], []>} : vector<8x16xbf16>, vector<16x8xbf16>, vector<8x8xf32> -> vector<8x8xf32>
    %117 = arith.mulf %116, %49 : vector<8x8xf32>
    %cst_67 = arith.constant dense<0.000000e+00> : vector<8x8xf32>
    %118 = tpu.matmul %116, %51, %cst_67 {dimension_numbers = #tpu.dot_dimension_numbers<[1], [0], [0], [1], [0, 0, 1, 1], [], []>} : vector<8x8xf32>, vector<8x8xf32>, vector<8x8xf32> -> vector<8x8xf32>
    %119 = arith.mulf %118, %50 : vector<8x8xf32>
    %120 = arith.addf %117, %119 : vector<8x8xf32>
    %c1_68 = arith.constant 1 : index
    %c0_69 = arith.constant 0 : index
    %c0_70 = arith.constant 0 : index
    %121 = vector.load %arg14[%c1_68, %c0_69, %c0_70] : memref<2x16x16xbf16, #tpu.memory_space<vmem>>, vector<1x16x16xbf16>
    %122 = vector.shape_cast %121 : vector<1x16x16xbf16> to vector<16x16xbf16>
    %123 = arith.truncf %45 : vector<8x16xf32> to vector<8x16xbf16>
    %cst_71 = arith.constant dense<0.000000e+00> : vector<8x16xf32>
    %124 = tpu.matmul %123, %122, %cst_71 {dimension_numbers = #tpu.dot_dimension_numbers<[1], [0], [0], [1], [0, 0, 1, 1], [], []>} : vector<8x16xbf16>, vector<16x16xbf16>, vector<8x16xf32> -> vector<8x16xf32>
    %c1_72 = arith.constant 1 : index
    %c0_73 = arith.constant 0 : index
    %c0_74 = arith.constant 0 : index
    %125 = vector.load %arg15[%c1_72, %c0_73, %c0_74] : memref<2x16x16xbf16, #tpu.memory_space<vmem>>, vector<1x16x16xbf16>
    %126 = vector.shape_cast %125 : vector<1x16x16xbf16> to vector<16x16xbf16>
    %127 = arith.truncf %45 : vector<8x16xf32> to vector<8x16xbf16>
    %cst_75 = arith.constant dense<0.000000e+00> : vector<8x16xf32>
    %128 = tpu.matmul %127, %126, %cst_75 {dimension_numbers = #tpu.dot_dimension_numbers<[1], [0], [0], [1], [0, 0, 1, 1], [], []>} : vector<8x16xbf16>, vector<16x16xbf16>, vector<8x16xf32> -> vector<8x16xf32>
    %129 = arith.truncf %112 : vector<8x16xf32> to vector<8x16xbf16>
    %130 = arith.truncf %124 : vector<8x16xf32> to vector<8x16xbf16>
    %cst_76 = arith.constant dense<0.000000e+00> : vector<8x8xf32>
    %131 = tpu.matmul %129, %130, %cst_76 {dimension_numbers = #tpu.dot_dimension_numbers<[1], [1], [0], [0], [0, 0, 1, 0], [], []>} : vector<8x16xbf16>, vector<8x16xbf16>, vector<8x8xf32> -> vector<8x8xf32>
    %132 = arith.truncf %120 : vector<8x8xf32> to vector<8x8xbf16>
    %133 = arith.truncf %55 : vector<8x8xf32> to vector<8x8xbf16>
    %cst_77 = arith.constant dense<0.000000e+00> : vector<8x8xf32>
    %134 = tpu.matmul %132, %133, %cst_77 {dimension_numbers = #tpu.dot_dimension_numbers<[1], [1], [0], [0], [0, 0, 1, 0], [], []>} : vector<8x8xbf16>, vector<8x8xbf16>, vector<8x8xf32> -> vector<8x8xf32>
    %135 = arith.addf %131, %134 : vector<8x8xf32>
    %cst_78 = arith.constant 0.204124153 : f32
    %136 = vector.broadcast %cst_78 : f32 to vector<8x8xf32>
    %137 = arith.mulf %135, %136 : vector<8x8xf32>
    %cst_79 = arith.constant 0xFF800000 : f32
    %138 = vector.broadcast %cst_79 : f32 to vector<8x8xf32>
    %139 = arith.select %58, %137, %138 : vector<8x8xi1>, vector<8x8xf32>
    %cst_80 = arith.constant dense<0xFF800000> : vector<8xf32>
    %140 = vector.multi_reduction <maximumf>, %139, %cst_80 [1] : vector<8x8xf32> to vector<8xf32>
    %141 = vector.shape_cast %140 : vector<8xf32> to vector<8x1xf32>
    %142 = vector.broadcast %141 : vector<8x1xf32> to vector<8x8xf32>
    %143 = arith.subf %139, %142 : vector<8x8xf32>
    %144 = math.exp %143 : vector<8x8xf32>
    %cst_81 = arith.constant dense<0.000000e+00> : vector<8xf32>
    %145 = vector.multi_reduction <add>, %144, %cst_81 [1] : vector<8x8xf32> to vector<8xf32>
    %146 = vector.shape_cast %145 : vector<8xf32> to vector<8x1xf32>
    %147 = tpu.reciprocal %146 {approx = true} : vector<8x1xf32> -> vector<8x1xf32>
    %148 = vector.broadcast %147 : vector<8x1xf32> to vector<8x8xf32>
    %149 = arith.mulf %144, %148 : vector<8x8xf32>
    %150 = arith.truncf %149 : vector<8x8xf32> to vector<8x8xbf16>
    %151 = arith.truncf %128 : vector<8x16xf32> to vector<8x16xbf16>
    %cst_82 = arith.constant dense<0.000000e+00> : vector<8x16xf32>
    %152 = tpu.matmul %150, %151, %cst_82 {dimension_numbers = #tpu.dot_dimension_numbers<[1], [0], [0], [1], [0, 0, 1, 1], [], []>} : vector<8x8xbf16>, vector<8x16xbf16>, vector<8x16xf32> -> vector<8x16xf32>
    %c1_83 = arith.constant 1 : index
    %c0_84 = arith.constant 0 : index
    %c0_85 = arith.constant 0 : index
    %153 = vector.load %arg16[%c1_83, %c0_84, %c0_85] : memref<2x16x32xbf16, #tpu.memory_space<vmem>>, vector<1x16x32xbf16>
    %154 = vector.shape_cast %153 : vector<1x16x32xbf16> to vector<16x32xbf16>
    %155 = arith.truncf %152 : vector<8x16xf32> to vector<8x16xbf16>
    %cst_86 = arith.constant dense<0.000000e+00> : vector<8x32xf32>
    %156 = tpu.matmul %155, %154, %cst_86 {dimension_numbers = #tpu.dot_dimension_numbers<[1], [0], [0], [1], [0, 0, 1, 1], [], []>} : vector<8x16xbf16>, vector<16x32xbf16>, vector<8x32xf32> -> vector<8x32xf32>
    %157 = arith.addf %108, %156 : vector<8x32xf32>
    %158 = arith.addf %157, %0 : vector<8x32xf32>
    %c0_87 = arith.constant 0 : index
    %c0_88 = arith.constant 0 : index
    %159 = vector.load %arg22[%c0_87, %c0_88] : memref<8x32xf32, #tpu.memory_space<vmem>>, vector<8x32xf32>
    tpu.vector_store %arg22[%c0_87, %c0_88], %158 {strides = array<i32>} : memref<8x32xf32, #tpu.memory_space<vmem>>, vector<8x32xf32>,
    %160 = arith.mulf %158, %158 : vector<8x32xf32>
    %cst_89 = arith.constant dense<0.000000e+00> : vector<8xf32>
    %161 = vector.multi_reduction <add>, %160, %cst_89 [1] : vector<8x32xf32> to vector<8xf32>
    %162 = vector.shape_cast %161 : vector<8xf32> to vector<8x1xf32>
    %cst_90 = arith.constant 3.200000e+01 : f32
    %163 = vector.broadcast %cst_90 : f32 to vector<8x1xf32>
    %164 = arith.divf %162, %163 : vector<8x1xf32>
    %cst_91 = arith.constant 9.99999997E-7 : f32
    %165 = vector.broadcast %cst_91 : f32 to vector<8x1xf32>
    %166 = arith.addf %164, %165 : vector<8x1xf32>
    %167 = math.rsqrt %166 : vector<8x1xf32>
    %168 = vector.broadcast %167 : vector<8x1xf32> to vector<8x32xf32>
    %169 = arith.mulf %158, %168 : vector<8x32xf32>
    %c0_92 = arith.constant 0 : index
    %c0_93 = arith.constant 0 : index
    %170 = vector.load %arg17[%c0_92, %c0_93] : memref<1x32xf32, #tpu.memory_space<vmem>>, vector<1x32xf32>
    %171 = vector.broadcast %170 : vector<1x32xf32> to vector<8x32xf32>
    %172 = arith.mulf %169, %171 : vector<8x32xf32>
    %c0_94 = arith.constant 0 : index
    %c0_95 = arith.constant 0 : index
    %173 = vector.load %arg18[%c0_94, %c0_95] : memref<32x64xbf16, #tpu.memory_space<vmem>>, vector<32x64xbf16>
    %174 = arith.truncf %172 : vector<8x32xf32> to vector<8x32xbf16>
    %cst_96 = arith.constant dense<0.000000e+00> : vector<8x64xf32>
    %175 = tpu.matmul %174, %173, %cst_96 {dimension_numbers = #tpu.dot_dimension_numbers<[1], [0], [0], [1], [0, 0, 1, 1], [], []>} : vector<8x32xbf16>, vector<32x64xbf16>, vector<8x64xf32> -> vector<8x64xf32>
    %c0_97 = arith.constant 0 : index
    %c0_98 = arith.constant 0 : index
    %176 = vector.load %arg19[%c0_97, %c0_98] : memref<32x64xbf16, #tpu.memory_space<vmem>>, vector<32x64xbf16>
    %177 = arith.truncf %172 : vector<8x32xf32> to vector<8x32xbf16>
    %cst_99 = arith.constant dense<0.000000e+00> : vector<8x64xf32>
    %178 = tpu.matmul %177, %176, %cst_99 {dimension_numbers = #tpu.dot_dimension_numbers<[1], [0], [0], [1], [0, 0, 1, 1], [], []>} : vector<8x32xbf16>, vector<32x64xbf16>, vector<8x64xf32> -> vector<8x64xf32>
    %179 = arith.negf %175 : vector<8x64xf32>
    %180 = math.exp %179 : vector<8x64xf32>
    %cst_100 = arith.constant 1.000000e+00 : f32
    %181 = vector.broadcast %cst_100 : f32 to vector<8x64xf32>
    %182 = arith.addf %181, %180 : vector<8x64xf32>
    %183 = arith.divf %181, %182 : vector<8x64xf32>
    %184 = arith.mulf %175, %183 : vector<8x64xf32>
    %185 = arith.mulf %184, %178 : vector<8x64xf32>
    %c0_101 = arith.constant 0 : index
    %c0_102 = arith.constant 0 : index
    %186 = vector.load %arg20[%c0_101, %c0_102] : memref<64x32xbf16, #tpu.memory_space<vmem>>, vector<64x32xbf16>
    %187 = arith.truncf %185 : vector<8x64xf32> to vector<8x64xbf16>
    %cst_103 = arith.constant dense<0.000000e+00> : vector<8x32xf32>
    %188 = tpu.matmul %187, %186, %cst_103 {dimension_numbers = #tpu.dot_dimension_numbers<[1], [0], [0], [1], [0, 0, 1, 1], [], []>} : vector<8x64xbf16>, vector<64x32xbf16>, vector<8x32xf32> -> vector<8x32xf32>
    %c0_104 = arith.constant 0 : index
    %c0_105 = arith.constant 0 : index
    %189 = vector.load %arg21[%c0_104, %c0_105] : memref<8x32xf32, #tpu.memory_space<vmem>>, vector<8x32xf32>
    tpu.vector_store %arg21[%c0_104, %c0_105], %188 {strides = array<i32>} : memref<8x32xf32, #tpu.memory_space<vmem>>, vector<8x32xf32>,
    return
  }
  func.func @transform_0(%arg0: i32) -> (i32, i32) {
    %c0_i32 = arith.constant 0 : i32
    %c0_i32_0 = arith.constant 0 : i32
    %c0_i32_1 = arith.constant 0 : i32
    return %c0_i32, %c0_i32_0 : i32, i32
  }
  func.func @transform_1(%arg0: i32) -> (i32, i32) {
    %c0_i32 = arith.constant 0 : i32
    %c0_i32_0 = arith.constant 0 : i32
    %c0_i32_1 = arith.constant 0 : i32
    return %c0_i32, %c0_i32_0 : i32, i32
  }
  func.func @transform_2(%arg0: i32) -> (i32, i32) {
    %c0_i32 = arith.constant 0 : i32
    %c0_i32_0 = arith.constant 0 : i32
    %c0_i32_1 = arith.constant 0 : i32
    return %c0_i32, %c0_i32_0 : i32, i32
  }
  func.func @transform_3(%arg0: i32) -> (i32, i32) {
    %c0_i32 = arith.constant 0 : i32
    %c0_i32_0 = arith.constant 0 : i32
    %c0_i32_1 = arith.constant 0 : i32
    return %c0_i32, %c0_i32_0 : i32, i32
  }
  func.func @transform_4(%arg0: i32) -> (i32, i32) {
    %c0_i32 = arith.constant 0 : i32
    %c0_i32_0 = arith.constant 0 : i32
    %c0_i32_1 = arith.constant 0 : i32
    return %c0_i32, %c0_i32_0 : i32, i32
  }
  func.func @transform_5(%arg0: i32) -> (i32, i32) {
    %c0_i32 = arith.constant 0 : i32
    %c0_i32_0 = arith.constant 0 : i32
    %c0_i32_1 = arith.constant 0 : i32
    return %c0_i32, %c0_i32_0 : i32, i32
  }
  func.func @transform_6(%arg0: i32) -> (i32, i32) {
    %c0_i32 = arith.constant 0 : i32
    %c0_i32_0 = arith.constant 0 : i32
    %c0_i32_1 = arith.constant 0 : i32
    return %c0_i32, %c0_i32_0 : i32, i32
  }
  func.func @transform_7(%arg0: i32) -> (i32, i32) {
    %c0_i32 = arith.constant 0 : i32
    %c0_i32_0 = arith.constant 0 : i32
    %c0_i32_1 = arith.constant 0 : i32
    return %c0_i32, %c0_i32_0 : i32, i32
  }
  func.func @transform_8(%arg0: i32) -> (i32, i32, i32) {
    %c0_i32 = arith.constant 0 : i32
    %c0_i32_0 = arith.constant 0 : i32
    %c0_i32_1 = arith.constant 0 : i32
    %c0_i32_2 = arith.constant 0 : i32
    return %c0_i32, %c0_i32_0, %c0_i32_1 : i32, i32, i32
  }
  func.func @transform_9(%arg0: i32) -> (i32, i32, i32) {
    %c0_i32 = arith.constant 0 : i32
    %c0_i32_0 = arith.constant 0 : i32
    %c0_i32_1 = arith.constant 0 : i32
    %c0_i32_2 = arith.constant 0 : i32
    return %c0_i32, %c0_i32_0, %c0_i32_1 : i32, i32, i32
  }
  func.func @transform_10(%arg0: i32) -> (i32, i32) {
    %c0_i32 = arith.constant 0 : i32
    %c0_i32_0 = arith.constant 0 : i32
    %c0_i32_1 = arith.constant 0 : i32
    return %c0_i32, %c0_i32_0 : i32, i32
  }
  func.func @transform_11(%arg0: i32) -> (i32, i32) {
    %c0_i32 = arith.constant 0 : i32
    %c0_i32_0 = arith.constant 0 : i32
    %c0_i32_1 = arith.constant 0 : i32
    return %c0_i32, %c0_i32_0 : i32, i32
  }
  func.func @transform_12(%arg0: i32) -> (i32, i32) {
    %c0_i32 = arith.constant 0 : i32
    %c0_i32_0 = arith.constant 0 : i32
    %c0_i32_1 = arith.constant 0 : i32
    return %c0_i32, %c0_i32_0 : i32, i32
  }
  func.func @transform_13(%arg0: i32) -> (i32, i32, i32) {
    %c0_i32 = arith.constant 0 : i32
    %c0_i32_0 = arith.constant 0 : i32
    %c0_i32_1 = arith.constant 0 : i32
    %c0_i32_2 = arith.constant 0 : i32
    return %c0_i32, %c0_i32_0, %c0_i32_1 : i32, i32, i32
  }
  func.func @transform_14(%arg0: i32) -> (i32, i32, i32) {
    %c0_i32 = arith.constant 0 : i32
    %c0_i32_0 = arith.constant 0 : i32
    %c0_i32_1 = arith.constant 0 : i32
    %c0_i32_2 = arith.constant 0 : i32
    return %c0_i32, %c0_i32_0, %c0_i32_1 : i32, i32, i32
  }
  func.func @transform_15(%arg0: i32) -> (i32, i32, i32) {
    %c0_i32 = arith.constant 0 : i32
    %c0_i32_0 = arith.constant 0 : i32
    %c0_i32_1 = arith.constant 0 : i32
    %c0_i32_2 = arith.constant 0 : i32
    return %c0_i32, %c0_i32_0, %c0_i32_1 : i32, i32, i32
  }
  func.func @transform_16(%arg0: i32) -> (i32, i32) {
    %c0_i32 = arith.constant 0 : i32
    %c0_i32_0 = arith.constant 0 : i32
    %c0_i32_1 = arith.constant 0 : i32
    return %c0_i32, %c0_i32_0 : i32, i32
  }
  func.func @transform_17(%arg0: i32) -> (i32, i32) {
    %c0_i32 = arith.constant 0 : i32
    %c0_i32_0 = arith.constant 0 : i32
    %c0_i32_1 = arith.constant 0 : i32
    return %c0_i32, %c0_i32_0 : i32, i32
  }
  func.func @transform_18(%arg0: i32) -> (i32, i32) {
    %c0_i32 = arith.constant 0 : i32
    %c0_i32_0 = arith.constant 0 : i32
    %c0_i32_1 = arith.constant 0 : i32
    return %c0_i32, %c0_i32_0 : i32, i32
  }
  func.func @transform_19(%arg0: i32) -> (i32, i32) {
    %c0_i32 = arith.constant 0 : i32
    %c0_i32_0 = arith.constant 0 : i32
    %c0_i32_1 = arith.constant 0 : i32
    return %c0_i32, %c0_i32_0 : i32, i32
  }
  func.func @transform_20(%arg0: i32) -> (i32, i32) {
    %c0_i32 = arith.constant 0 : i32
    %c0_i32_0 = arith.constant 0 : i32
    %c0_i32_1 = arith.constant 0 : i32
    return %c0_i32, %c0_i32_0 : i32, i32
  }
  func.func @transform_21(%arg0: i32) -> (i32, i32) {
    %c0_i32 = arith.constant 0 : i32
    %c0_i32_0 = arith.constant 0 : i32
    %c0_i32_1 = arith.constant 0 : i32
    return %c0_i32, %c0_i32_0 : i32, i32
  }
}

</mosaic_0001>

<llo_original>
// kernel: tile.6
$region0: #{tile.6}
  #allocation0 [shape = 's32[1]{0}', space=sflag, size = 0x4, scoped, tag = 'scoped memory for tile.6']
  %s0 = inlined_call_operand.vmem [shape: f32[2], index: 0, kind: input, shape index: {}]
  %s1 = inlined_call_operand.vmem [shape: f32[4,2], index: 1, kind: output, shape index: {}]
  // Predicated region
  $region2: #{tile.6} parent=0 // pred_check
    _
  $region3: #{tile.6} parent=0 // pred_check_branch
    %3 = sbr.rel (0) target = $region5
  $region4: #{tile.6} parent=0 // pred_region
    _
  $region5: #{tile.6} parent=0 // pred_fallthru
    _
  %v4 = vld [vmem:[%s0] ss:$0 sm:$0xff]
  %5 = vst [vmem:[%s1] sm:$0xf] %v4

// kernel: mul.21
$region0: #{mul.21}
  %s0 = inlined_call_operand.vmem [shape: f32[4,2], index: 0, kind: input, shape index: {}]
  %s1 = inlined_call_operand.vmem [shape: f32[8], index: 1, kind: output, shape index: {}]
  $region1: #{mul.21} parent=0
    #allocation0 [shape = 'u8[4096]{0}', space=vmem, size = 0x1000, scoped, tag = 'scoped mem for output reshape']
    #allocation1 [shape = 'u8[4096]{0}', space=vmem, size = 0x1000, scoped, tag = 'scoped mem for input reshape']
    %s3 = sshllo.u32 0, 4
    %v4 = vld [vmem:[%s0] sm:%s3]
    %5 = vst [vmem:[#allocation1] sm:%s3] %v4
    %v6 = vld [vmem:[#allocation1] sm:$0x1]
    %vm7 = vcmask 15360
    %8 = vst.msk [vmem:[#allocation0] sm:$0x1] %vm7, %v6
    %s9 = scalar_lea.vmem [#allocation1], 3
    %v10 = vld [vmem:[%s9] sm:$0x1]
    %11 = vrot.lane.b32.xlu0 %v10, 6
    %v12 = vpop.permute.xlu0 %11
    %vm13 = vcmask 64560
    %14 = vst.msk [vmem:[#allocation0] sm:$0x1] %vm13, %v12
    %s15 = scalar_lea.vmem [#allocation1], 2
    %v16 = vld [vmem:[%s15] sm:$0x1]
    %17 = vrot.lane.b32.xlu0 %v16, 4
    %v18 = vpop.permute.xlu0 %17
    %vm19 = vcmask 48160
    %20 = vst.msk [vmem:[#allocation0] sm:$0x1] %vm19, %v18
    %s21 = scalar_lea.vmem [#allocation1], 1
    %v22 = vld [vmem:[%s21] sm:$0x1]
    %23 = vrot.lane.b32.xlu0 %v22, 2
    %v24 = vpop.permute.xlu0 %23
    %vm25 = vcmask 31760
    %26 = vst.msk [vmem:[#allocation0] sm:$0x1] %vm25, %v24
    %s28 = sshllo.u32 0, 1
    %v30 = vld [vmem:[#allocation0] sm:%s28]
    %s31 = sshllo.u32 0, 1
    %32 = vst [vmem:[%s1] sm:%s31] %v30

// kernel: deepseek_decoder_layer.1
$region0: #{deepseek_decoder_layer.1}
  #allocation0 [shape = 'u32[]', space=smem, size = 0x4, offset = 0x4, fixed_abs, tag = 'smem constant byte address 0x4 - core index']
  #allocation1 [shape = 'u32[144,128]{1,0:T(1,128)}', space=vmem, size = 0x12000, scoped, tag = 'internal scratch']
  %s0 = inlined_call_operand.vmem [shape: f32[8,32], index: 0, kind: input, shape index: {}, may-alias: {0,1}]
  %s1 = inlined_call_operand.vmem [shape: f32[8,32], index: 1, kind: input, shape index: {}, may-alias: {0,1}]
  %s2 = inlined_call_operand.vmem [shape: f32[8,8], index: 2, kind: input, shape index: {}]
  %s3 = inlined_call_operand.vmem [shape: f32[8,8], index: 3, kind: input, shape index: {}]
  %s4 = inlined_call_operand.vmem [shape: f32[8,8], index: 4, kind: input, shape index: {}]
  %s5 = inlined_call_operand.vmem [shape: f32[1,32], index: 5, kind: input, shape index: {}]
  %s6 = inlined_call_operand.vmem [shape: bf16[32,16], index: 6, kind: input, shape index: {}]
  %s7 = inlined_call_operand.vmem [shape: f32[1,16], index: 7, kind: input, shape index: {}]
  %s8 = inlined_call_operand.vmem [shape: bf16[2,16,16], index: 8, kind: input, shape index: {}]
  %s9 = inlined_call_operand.vmem [shape: bf16[2,16,8], index: 9, kind: input, shape index: {}]
  %s10 = inlined_call_operand.vmem [shape: bf16[32,16], index: 10, kind: input, shape index: {}]
  %s11 = inlined_call_operand.vmem [shape: f32[1,16], index: 11, kind: input, shape index: {}]
  %s12 = inlined_call_operand.vmem [shape: bf16[32,8], index: 12, kind: input, shape index: {}]
  %s13 = inlined_call_operand.vmem [shape: bf16[2,16,16], index: 13, kind: input, shape index: {}]
  %s14 = inlined_call_operand.vmem [shape: bf16[2,16,16], index: 14, kind: input, shape index: {}]
  %s15 = inlined_call_operand.vmem [shape: bf16[2,16,32], index: 15, kind: input, shape index: {}]
  %s16 = inlined_call_operand.vmem [shape: f32[1,32], index: 16, kind: input, shape index: {}]
  %s17 = inlined_call_operand.vmem [shape: bf16[32,64], index: 17, kind: input, shape index: {}]
  %s18 = inlined_call_operand.vmem [shape: bf16[32,64], index: 18, kind: input, shape index: {}]
  %s19 = inlined_call_operand.vmem [shape: bf16[64,32], index: 19, kind: input, shape index: {}]
  %s20 = inlined_call_operand.hbm [shape: f32[8,32], index: 20, kind: output, shape index: {0}]
  %s21 = inlined_call_operand.hbm [shape: f32[8,32], index: 21, kind: output, shape index: {1}]
  %22 = xla_tuple %s20, %s21
  %s23 = sld [smem:[#allocation0]]
  $region98: #{deepseek_decoder_layer.1} parent=0
    _
  %s25 = ssub.s32 1, %s23
  %s26 = scalar_select 0, %s25, %s23
  $region1: #{deepseek_decoder_layer.1} parent=0
    #allocation2 [shape = 'u8[4096]{0}', space=vmem, size = 0x1000, scoped, tag = 'output window, operand 0, single buffered']
    #allocation3 [shape = 's32[1]{0}', space=sflag, size = 0x4, scoped, tag = 'scoped memory for deepseek_decoder_layer.1']
    #allocation4 [shape = 'u8[4096]{0}', space=vmem, size = 0x1000, scoped, tag = 'output window, operand 1, single buffered']
    #allocation5 [shape = 's32[1]{0}', space=sflag, size = 0x4, scoped, tag = 'scoped memory for deepseek_decoder_layer.1']
    %27 = vsyncpa [#allocation3], 0
    %28 = vsyncpa [#allocation5], 0
    // Predicated region
    $region2: #{deepseek_decoder_layer.1} parent=1 // pred_check
      _
    $region3: #{deepseek_decoder_layer.1} parent=1 // pred_check_branch
      %30 = sbr.rel (0) target = $region5
    $region4: #{deepseek_decoder_layer.1} parent=1 // pred_region
      _
    $region5: #{deepseek_decoder_layer.1} parent=1 // pred_fallthru
      _
    // Predicated region
    $region6: #{deepseek_decoder_layer.1} parent=1 // pred_check
      _
    $region7: #{deepseek_decoder_layer.1} parent=1 // pred_check_branch
      %32 = sbr.rel (0) target = $region9
    $region8: #{deepseek_decoder_layer.1} parent=1 // pred_region
      _
    $region9: #{deepseek_decoder_layer.1} parent=1 // pred_fallthru
      _
    // Predicated region
    $region10: #{deepseek_decoder_layer.1} parent=1 // pred_check
      _
    $region11: #{deepseek_decoder_layer.1} parent=1 // pred_check_branch
      %34 = sbr.rel (0) target = $region13
    $region12: #{deepseek_decoder_layer.1} parent=1 // pred_region
      _
    $region13: #{deepseek_decoder_layer.1} parent=1 // pred_fallthru
      _
    // Predicated region
    $region14: #{deepseek_decoder_layer.1} parent=1 // pred_check
      _
    $region15: #{deepseek_decoder_layer.1} parent=1 // pred_check_branch
      %36 = sbr.rel (0) target = $region17
    $region16: #{deepseek_decoder_layer.1} parent=1 // pred_region
      _
    $region17: #{deepseek_decoder_layer.1} parent=1 // pred_fallthru
      _
    // Predicated region
    $region18: #{deepseek_decoder_layer.1} parent=1 // pred_check
      _
    $region19: #{deepseek_decoder_layer.1} parent=1 // pred_check_branch
      %38 = sbr.rel (0) target = $region21
    $region20: #{deepseek_decoder_layer.1} parent=1 // pred_region
      _
    $region21: #{deepseek_decoder_layer.1} parent=1 // pred_fallthru
      _
    // Predicated region
    $region22: #{deepseek_decoder_layer.1} parent=1 // pred_check
      _
    $region23: #{deepseek_decoder_layer.1} parent=1 // pred_check_branch
      %40 = sbr.rel (0) target = $region25
    $region24: #{deepseek_decoder_layer.1} parent=1 // pred_region
      _
    $region25: #{deepseek_decoder_layer.1} parent=1 // pred_fallthru
      _
    // Predicated region
    $region26: #{deepseek_decoder_layer.1} parent=1 // pred_check
      _
    $region27: #{deepseek_decoder_layer.1} parent=1 // pred_check_branch
      %42 = sbr.rel (0) target = $region29
    $region28: #{deepseek_decoder_layer.1} parent=1 // pred_region
      _
    $region29: #{deepseek_decoder_layer.1} parent=1 // pred_fallthru
      _
    // Predicated region
    $region30: #{deepseek_decoder_layer.1} parent=1 // pred_check
      _
    $region31: #{deepseek_decoder_layer.1} parent=1 // pred_check_branch
      %44 = sbr.rel (0) target = $region33
    $region32: #{deepseek_decoder_layer.1} parent=1 // pred_region
      _
    $region33: #{deepseek_decoder_layer.1} parent=1 // pred_fallthru
      _
    // Predicated region
    $region34: #{deepseek_decoder_layer.1} parent=1 // pred_check
      _
    $region35: #{deepseek_decoder_layer.1} parent=1 // pred_check_branch
      %46 = sbr.rel (0) target = $region37
    $region36: #{deepseek_decoder_layer.1} parent=1 // pred_region
      _
    $region37: #{deepseek_decoder_layer.1} parent=1 // pred_fallthru
      _
    // Predicated region
    $region38: #{deepseek_decoder_layer.1} parent=1 // pred_check
      _
    $region39: #{deepseek_decoder_layer.1} parent=1 // pred_check_branch
      %48 = sbr.rel (0) target = $region41
    $region40: #{deepseek_decoder_layer.1} parent=1 // pred_region
      _
    $region41: #{deepseek_decoder_layer.1} parent=1 // pred_fallthru
      _
    // Predicated region
    $region42: #{deepseek_decoder_layer.1} parent=1 // pred_check
      _
    $region43: #{deepseek_decoder_layer.1} parent=1 // pred_check_branch
      %50 = sbr.rel (0) target = $region45
    $region44: #{deepseek_decoder_layer.1} parent=1 // pred_region
      _
    $region45: #{deepseek_decoder_layer.1} parent=1 // pred_fallthru
      _
    // Predicated region
    $region46: #{deepseek_decoder_layer.1} parent=1 // pred_check
      _
    $region47: #{deepseek_decoder_layer.1} parent=1 // pred_check_branch
      %52 = sbr.rel (0) target = $region49
    $region48: #{deepseek_decoder_layer.1} parent=1 // pred_region
      _
    $region49: #{deepseek_decoder_layer.1} parent=1 // pred_fallthru
      _
    // Predicated region
    $region50: #{deepseek_decoder_layer.1} parent=1 // pred_check
      _
    $region51: #{deepseek_decoder_layer.1} parent=1 // pred_check_branch
      %54 = sbr.rel (0) target = $region53
    $region52: #{deepseek_decoder_layer.1} parent=1 // pred_region
      _
    $region53: #{deepseek_decoder_layer.1} parent=1 // pred_fallthru
      _
    // Predicated region
    $region54: #{deepseek_decoder_layer.1} parent=1 // pred_check
      _
    $region55: #{deepseek_decoder_layer.1} parent=1 // pred_check_branch
      %56 = sbr.rel (0) target = $region57
    $region56: #{deepseek_decoder_layer.1} parent=1 // pred_region
      _
    $region57: #{deepseek_decoder_layer.1} parent=1 // pred_fallthru
      _
    // Predicated region
    $region58: #{deepseek_decoder_layer.1} parent=1 // pred_check
      _
    $region59: #{deepseek_decoder_layer.1} parent=1 // pred_check_branch
      %58 = sbr.rel (0) target = $region61
    $region60: #{deepseek_decoder_layer.1} parent=1 // pred_region
      _
    $region61: #{deepseek_decoder_layer.1} parent=1 // pred_fallthru
      _
    // Predicated region
    $region62: #{deepseek_decoder_layer.1} parent=1 // pred_check
      _
    $region63: #{deepseek_decoder_layer.1} parent=1 // pred_check_branch
      %60 = sbr.rel (0) target = $region65
    $region64: #{deepseek_decoder_layer.1} parent=1 // pred_region
      _
    $region65: #{deepseek_decoder_layer.1} parent=1 // pred_fallthru
      _
    // Predicated region
    $region66: #{deepseek_decoder_layer.1} parent=1 // pred_check
      _
    $region67: #{deepseek_decoder_layer.1} parent=1 // pred_check_branch
      %62 = sbr.rel (0) target = $region69
    $region68: #{deepseek_decoder_layer.1} parent=1 // pred_region
      _
    $region69: #{deepseek_decoder_layer.1} parent=1 // pred_fallthru
      _
    // Predicated region
    $region70: #{deepseek_decoder_layer.1} parent=1 // pred_check
      _
    $region71: #{deepseek_decoder_layer.1} parent=1 // pred_check_branch
      %64 = sbr.rel (0) target = $region73
    $region72: #{deepseek_decoder_layer.1} parent=1 // pred_region
      _
    $region73: #{deepseek_decoder_layer.1} parent=1 // pred_fallthru
      _
    // Predicated region
    $region74: #{deepseek_decoder_layer.1} parent=1 // pred_check
      _
    $region75: #{deepseek_decoder_layer.1} parent=1 // pred_check_branch
      %66 = sbr.rel (0) target = $region77
    $region76: #{deepseek_decoder_layer.1} parent=1 // pred_region
      _
    $region77: #{deepseek_decoder_layer.1} parent=1 // pred_fallthru
      _
    // Predicated region
    $region78: #{deepseek_decoder_layer.1} parent=1 // pred_check
      _
    $region79: #{deepseek_decoder_layer.1} parent=1 // pred_check_branch
      %68 = sbr.rel (0) target = $region81
    $region80: #{deepseek_decoder_layer.1} parent=1 // pred_region
      _
    $region81: #{deepseek_decoder_layer.1} parent=1 // pred_fallthru
      _
    %v70 = vld [vmem:[%s0] sm:$0xff]
    %v71 = vmul.f32 %v70, %v70
    %vm72 = vcmask 261120
    %v73 = vsel %vm72, %v71, 0.0
    %74 = vadd.xlane.f32.xlu0 %v73
    %v75 = vpop.xlane.xlu0 %74
    %v76 = vrcp.pop 32.0
    %v77 = vmul.f32 %v75, %v76
    %v78 = vadd.f32 %v77, 1e-06
    %v79 = vrsqrt.pop %v78
    %v80 = vmul.f32 %v70, %v79
    %v81 = vld [vmem:[%s5] sm:$0x1]
    %v83 = vlaneseq
    %v84 = vshrl.u32 %v83, 7
    %v85 = vsub.s32 0, %v84
    %v86 = vrot.slane %v81, %v85
    %v88 = vmul.f32 %v80, %v86
    %v89 = vld [vmem:[%s6] sm:$0xf]
    %v90 = vld [vmem:[%s6 + $0x4] sm:$0xf]
    %v91 = vld [vmem:[%s6 + $0x8] sm:$0xf]
    %v92 = vld [vmem:[%s6 + $0xc] sm:$0xf]
    %v93 = vpack.c.bf16 %v88, %v88
    %v98 = vunpack.c.l.b16 %v89
    %v99 = vunpack.c.l.b16 %v90
    %v100 = vunpack.c.l.b16 %v91
    %v101 = vunpack.c.l.b16 %v92
    %v102 = vpack.c.b16 %v99, %v98
    %v103 = vpack.c.b16 %v101, %v100
    %v107 = vsel %vm72, %v93, 0
    %109 = vmatprep.subr.bf16.mxu0 0
    %110 = vmatpush1.bf16.msra.mxu0 %v102
    %111 = vmatprep.subr.bf16.mxu0 0
    %112 = vmatpush1.bf16.msra.mxu0 %v103
    %113 = vmatprep.subr.bf16.mxu0 0
    %114 = vmatpush1.bf16.msra.mxu0 0
    %115 = vmatprep.subr.bf16.mxu0 0
    %116 = vmatpush1.bf16.msra.mxu0 0
    %117 = vmatprep.subr.bf16.mxu0 0
    %118 = vmatpush1.bf16.msra.mxu0 0
    %119 = vmatprep.subr.bf16.mxu0 0
    %120 = vmatpush1.bf16.msra.mxu0 0
    %121 = vmatprep.subr.bf16.mxu0 0
    %122 = vmatpush1.bf16.msra.mxu0 0
    %123 = vmatprep.subr.bf16.mxu0 0
    %124 = vmatpush1.bf16.msra.mxu0 0
    %125 = vmatprep.subr.bf16.mxu0 0
    %126 = vmatpush1.bf16.msra.mxu0 0
    %127 = vmatprep.subr.bf16.mxu0 0
    %128 = vmatpush1.bf16.msra.mxu0 0
    %129 = vmatprep.subr.bf16.mxu0 0
    %130 = vmatpush1.bf16.msra.mxu0 0
    %131 = vmatprep.subr.bf16.mxu0 0
    %132 = vmatpush1.bf16.msra.mxu0 0
    %133 = vmatprep.subr.bf16.mxu0 0
    %134 = vmatpush1.bf16.msra.mxu0 0
    %135 = vmatprep.subr.bf16.mxu0 0
    %136 = vmatpush1.bf16.msra.mxu0 0
    %137 = vmatprep.subr.bf16.mxu0 0
    %138 = vmatpush1.bf16.msra.mxu0 0
    %139 = vmatprep.subr.bf16.mxu0 0
    %140 = vmatpush1.bf16.msra.mxu0 0
    %141 = vmatprep.mubr.bf16.mxu0 0
    %142 = vmatmul.mubr.bf16.gmra.mrb[0].mxu0 %v107
    %v143 = vpop.f32.mrb[0].mxu0
    %v144 = vadd.f32 0.0, %v143
    %v145 = vpop.f32.mrb[0].mxu0
    %v146 = vpop.f32.mrb[0].mxu0
    %v147 = vpop.f32.mrb[0].mxu0
    %148 = vdwg.mxu0
    %v149 = vmul.f32 %v144, %v144
    %vm150 = vcmask 130048
    %v151 = vsel %vm150, %v149, 0.0
    %152 = vadd.xlane.f32.xlu0 %v151
    %v153 = vpop.xlane.xlu0 %152
    %v154 = vrcp.pop 16.0
    %v155 = vmul.f32 %v153, %v154
    %v156 = vadd.f32 %v155, 1e-06
    %v157 = vrsqrt.pop %v156
    %v158 = vmul.f32 %v144, %v157
    %v159 = vld [vmem:[%s7] sm:$0x1]
    %v161 = vlaneseq
    %v162 = vshrl.u32 %v161, 7
    %v163 = vsub.s32 0, %v162
    %v164 = vrot.slane %v159, %v163
    %v166 = vmul.f32 %v158, %v164
    %v167 = vld [vmem:[%s10] sm:$0xf]
    %v168 = vld [vmem:[%s10 + $0x4] sm:$0xf]
    %v169 = vld [vmem:[%s10 + $0x8] sm:$0xf]
    %v170 = vld [vmem:[%s10 + $0xc] sm:$0xf]
    %v175 = vunpack.c.l.b16 %v167
    %v176 = vunpack.c.l.b16 %v168
    %v177 = vunpack.c.l.b16 %v169
    %v178 = vunpack.c.l.b16 %v170
    %v179 = vpack.c.b16 %v176, %v175
    %v180 = vpack.c.b16 %v178, %v177
    %183 = vmatprep.subr.bf16.mxu0 0
    %184 = vmatpush1.bf16.msra.mxu0 %v179
    %185 = vmatprep.subr.bf16.mxu0 0
    %186 = vmatpush1.bf16.msra.mxu0 %v180
    %187 = vmatprep.subr.bf16.mxu0 0
    %188 = vmatpush1.bf16.msra.mxu0 0
    %189 = vmatprep.subr.bf16.mxu0 0
    %190 = vmatpush1.bf16.msra.mxu0 0
    %191 = vmatprep.subr.bf16.mxu0 0
    %192 = vmatpush1.bf16.msra.mxu0 0
    %193 = vmatprep.subr.bf16.mxu0 0
    %194 = vmatpush1.bf16.msra.mxu0 0
    %195 = vmatprep.subr.bf16.mxu0 0
    %196 = vmatpush1.bf16.msra.mxu0 0
    %197 = vmatprep.subr.bf16.mxu0 0
    %198 = vmatpush1.bf16.msra.mxu0 0
    %199 = vmatprep.subr.bf16.mxu0 0
    %200 = vmatpush1.bf16.msra.mxu0 0
    %201 = vmatprep.subr.bf16.mxu0 0
    %202 = vmatpush1.bf16.msra.mxu0 0
    %203 = vmatprep.subr.bf16.mxu0 0
    %204 = vmatpush1.bf16.msra.mxu0 0
    %205 = vmatprep.subr.bf16.mxu0 0
    %206 = vmatpush1.bf16.msra.mxu0 0
    %207 = vmatprep.subr.bf16.mxu0 0
    %208 = vmatpush1.bf16.msra.mxu0 0
    %209 = vmatprep.subr.bf16.mxu0 0
    %210 = vmatpush1.bf16.msra.mxu0 0
    %211 = vmatprep.subr.bf16.mxu0 0
    %212 = vmatpush1.bf16.msra.mxu0 0
    %213 = vmatprep.subr.bf16.mxu0 0
    %214 = vmatpush1.bf16.msra.mxu0 0
    %215 = vmatprep.mubr.bf16.mxu0 0
    %216 = vmatmul.mubr.bf16.gmra.mrb[0].mxu0 %v107
    %v217 = vpop.f32.mrb[0].mxu0
    %v218 = vadd.f32 0.0, %v217
    %v219 = vpop.f32.mrb[0].mxu0
    %v220 = vpop.f32.mrb[0].mxu0
    %v221 = vpop.f32.mrb[0].mxu0
    %222 = vdwg.mxu0
    %v223 = vmul.f32 %v218, %v218
    %v224 = vsel %vm150, %v223, 0.0
    %225 = vadd.xlane.f32.xlu0 %v224
    %v226 = vpop.xlane.xlu0 %225
    %v227 = vmul.f32 %v226, %v154
    %v228 = vadd.f32 %v227, 1e-06
    %v229 = vrsqrt.pop %v228
    %v230 = vmul.f32 %v218, %v229
    %v231 = vld [vmem:[%s11] sm:$0x1]
    %v233 = vlaneseq
    %v234 = vshrl.u32 %v233, 7
    %v235 = vsub.s32 0, %v234
    %v236 = vrot.slane %v231, %v235
    %v238 = vmul.f32 %v230, %v236
    %v239 = vld [vmem:[%s12] sm:$0xf]
    %v240 = vld [vmem:[%s12 + $0x4] sm:$0xf]
    %v241 = vld [vmem:[%s12 + $0x8] sm:$0xf]
    %v242 = vld [vmem:[%s12 + $0xc] sm:$0xf]
    %v247 = vunpack.c.l.b16 %v239
    %v248 = vunpack.c.l.b16 %v240
    %v249 = vunpack.c.l.b16 %v241
    %v250 = vunpack.c.l.b16 %v242
    %v251 = vpack.c.b16 %v248, %v247
    %v252 = vpack.c.b16 %v250, %v249
    %255 = vmatprep.subr.bf16.mxu0 0
    %256 = vmatpush1.bf16.msra.mxu0 %v251
    %257 = vmatprep.subr.bf16.mxu0 0
    %258 = vmatpush1.bf16.msra.mxu0 %v252
    %259 = vmatprep.subr.bf16.mxu0 0
    %260 = vmatpush1.bf16.msra.mxu0 0
    %261 = vmatprep.subr.bf16.mxu0 0
    %262 = vmatpush1.bf16.msra.mxu0 0
    %263 = vmatprep.subr.bf16.mxu0 0
    %264 = vmatpush1.bf16.msra.mxu0 0
    %265 = vmatprep.subr.bf16.mxu0 0
    %266 = vmatpush1.bf16.msra.mxu0 0
    %267 = vmatprep.subr.bf16.mxu0 0
    %268 = vmatpush1.bf16.msra.mxu0 0
    %269 = vmatprep.subr.bf16.mxu0 0
    %270 = vmatpush1.bf16.msra.mxu0 0
    %271 = vmatprep.subr.bf16.mxu0 0
    %272 = vmatpush1.bf16.msra.mxu0 0
    %273 = vmatprep.subr.bf16.mxu0 0
    %274 = vmatpush1.bf16.msra.mxu0 0
    %275 = vmatprep.subr.bf16.mxu0 0
    %276 = vmatpush1.bf16.msra.mxu0 0
    %277 = vmatprep.subr.bf16.mxu0 0
    %278 = vmatpush1.bf16.msra.mxu0 0
    %279 = vmatprep.subr.bf16.mxu0 0
    %280 = vmatpush1.bf16.msra.mxu0 0
    %281 = vmatprep.subr.bf16.mxu0 0
    %282 = vmatpush1.bf16.msra.mxu0 0
    %283 = vmatprep.subr.bf16.mxu0 0
    %284 = vmatpush1.bf16.msra.mxu0 0
    %285 = vmatprep.subr.bf16.mxu0 0
    %286 = vmatpush1.bf16.msra.mxu0 0
    %287 = vmatprep.mubr.bf16.mxu0 0
    %288 = vmatmul.mubr.bf16.gmra.mrb[0].mxu0 %v107
    %v289 = vpop.f32.mrb[0].mxu0
    %v290 = vadd.f32 0.0, %v289
    %v291 = vpop.f32.mrb[0].mxu0
    %v292 = vpop.f32.mrb[0].mxu0
    %v293 = vpop.f32.mrb[0].mxu0
    %294 = vdwg.mxu0
    %v295 = vld [vmem:[%s2] sm:$0xff]
    %v296 = vld [vmem:[%s3] sm:$0xff]
    %v297 = vld [vmem:[%s4] sm:$0xff]
    %v298 = vmul.f32 %v290, %v295
    %vm299 = vcmask 64512
    %v301 = vsel %vm299, %v290, 0
    %303 = vmatprep.subr.mxu0 0.0
    %304 = vmatpush1.msra.mxu0 %v297
    %305 = vmatprep.subr.mxu0 0.0
    %306 = vmatpush1.msra.mxu0 0.0
    %307 = vmatprep.subr.mxu0 0.0
    %308 = vmatpush1.msra.mxu0 0.0
    %309 = vmatprep.subr.mxu0 0.0
    %310 = vmatpush1.msra.mxu0 0.0
    %311 = vmatprep.subr.mxu0 0.0
    %312 = vmatpush1.msra.mxu0 0.0
    %313 = vmatprep.subr.mxu0 0.0
    %314 = vmatpush1.msra.mxu0 0.0
    %315 = vmatprep.subr.mxu0 0.0
    %316 = vmatpush1.msra.mxu0 0.0
    %317 = vmatprep.subr.mxu0 0.0
    %318 = vmatpush1.msra.mxu0 0.0
    %319 = vmatprep.subr.mxu0 0.0
    %320 = vmatpush1.msra.mxu0 0.0
    %321 = vmatprep.subr.mxu0 0.0
    %322 = vmatpush1.msra.mxu0 0.0
    %323 = vmatprep.subr.mxu0 0.0
    %324 = vmatpush1.msra.mxu0 0.0
    %325 = vmatprep.subr.mxu0 0.0
    %326 = vmatpush1.msra.mxu0 0.0
    %327 = vmatprep.subr.mxu0 0.0
    %328 = vmatpush1.msra.mxu0 0.0
    %329 = vmatprep.subr.mxu0 0.0
    %330 = vmatpush1.msra.mxu0 0.0
    %331 = vmatprep.subr.mxu0 0.0
    %332 = vmatpush1.msra.mxu0 0.0
    %333 = vmatprep.subr.mxu0 0.0
    %334 = vmatpush1.msra.mxu0 0.0
    %335 = vmatprep.subr.mxu0 0.0
    %336 = vmatpush1.msra.mxu0 0.0
    %337 = vmatprep.subr.mxu0 0.0
    %338 = vmatpush1.msra.mxu0 0.0
    %339 = vmatprep.subr.mxu0 0.0
    %340 = vmatpush1.msra.mxu0 0.0
    %341 = vmatprep.subr.mxu0 0.0
    %342 = vmatpush1.msra.mxu0 0.0
    %343 = vmatprep.subr.mxu0 0.0
    %344 = vmatpush1.msra.mxu0 0.0
    %345 = vmatprep.subr.mxu0 0.0
    %346 = vmatpush1.msra.mxu0 0.0
    %347 = vmatprep.subr.mxu0 0.0
    %348 = vmatpush1.msra.mxu0 0.0
    %349 = vmatprep.subr.mxu0 0.0
    %350 = vmatpush1.msra.mxu0 0.0
    %351 = vmatprep.subr.mxu0 0.0
    %352 = vmatpush1.msra.mxu0 0.0
    %353 = vmatprep.subr.mxu0 0.0
    %354 = vmatpush1.msra.mxu0 0.0
    %355 = vmatprep.subr.mxu0 0.0
    %356 = vmatpush1.msra.mxu0 0.0
    %357 = vmatprep.subr.mxu0 0.0
    %358 = vmatpush1.msra.mxu0 0.0
    %359 = vmatprep.subr.mxu0 0.0
    %360 = vmatpush1.msra.mxu0 0.0
    %361 = vmatprep.subr.mxu0 0.0
    %362 = vmatpush1.msra.mxu0 0.0
    %363 = vmatprep.subr.mxu0 0.0
    %364 = vmatpush1.msra.mxu0 0.0
    %365 = vmatprep.subr.mxu0 0.0
    %366 = vmatpush1.msra.mxu0 0.0
    %367 = vmatprep.mubr.f32.mxu0 0.0
    %368 = vmatmul.mubr.f32.gmra.mrb[0].mxu0 %v301
    %v369 = vpop.f32.mrb[0].mxu0
    %v370 = vadd.f32 0.0, %v369
    %v371 = vpop.f32.mrb[0].mxu0
    %372 = vdwg.mxu0
    %v373 = vmul.f32 %v370, %v296
    %v374 = vadd.f32 %v298, %v373
    %v375 = vlaneseq
    %v376 = vshrl.u32 %v375, 7
    %v377 = vlaneseq
    %v378 = vand.u32 %v377, 127
    %vm379 = vcmp.le.s32.totalorder %v378, %v376
    %v380 = vld [vmem:[%s8] sm:$0xf]
    %v381 = vld [vmem:[%s8 + $0x4] sm:$0xf]
    %v382 = vpack.c.bf16 %v166, %v166
    %v385 = vunpack.c.l.b16 %v380
    %v386 = vunpack.c.l.b16 %v381
    %v387 = vpack.c.b16 %v386, %v385
    %v390 = vsel %vm150, %v382, 0
    %392 = vmatprep.subr.bf16.mxu0 0
    %393 = vmatpush1.bf16.msra.mxu0 %v387
    %394 = vmatprep.subr.bf16.mxu0 0
    %395 = vmatpush1.bf16.msra.mxu0 0
    %396 = vmatprep.subr.bf16.mxu0 0
    %397 = vmatpush1.bf16.msra.mxu0 0
    %398 = vmatprep.subr.bf16.mxu0 0
    %399 = vmatpush1.bf16.msra.mxu0 0
    %400 = vmatprep.subr.bf16.mxu0 0
    %401 = vmatpush1.bf16.msra.mxu0 0
    %402 = vmatprep.subr.bf16.mxu0 0
    %403 = vmatpush1.bf16.msra.mxu0 0
    %404 = vmatprep.subr.bf16.mxu0 0
    %405 = vmatpush1.bf16.msra.mxu0 0
    %406 = vmatprep.subr.bf16.mxu0 0
    %407 = vmatpush1.bf16.msra.mxu0 0
    %408 = vmatprep.subr.bf16.mxu0 0
    %409 = vmatpush1.bf16.msra.mxu0 0
    %410 = vmatprep.subr.bf16.mxu0 0
    %411 = vmatpush1.bf16.msra.mxu0 0
    %412 = vmatprep.subr.bf16.mxu0 0
    %413 = vmatpush1.bf16.msra.mxu0 0
    %414 = vmatprep.subr.bf16.mxu0 0
    %415 = vmatpush1.bf16.msra.mxu0 0
    %416 = vmatprep.subr.bf16.mxu0 0
    %417 = vmatpush1.bf16.msra.mxu0 0
    %418 = vmatprep.subr.bf16.mxu0 0
    %419 = vmatpush1.bf16.msra.mxu0 0
    %420 = vmatprep.subr.bf16.mxu0 0
    %421 = vmatpush1.bf16.msra.mxu0 0
    %422 = vmatprep.subr.bf16.mxu0 0
    %423 = vmatpush1.bf16.msra.mxu0 0
    %424 = vmatprep.mubr.bf16.mxu0 0
    %425 = vmatmul.mubr.bf16.gmra.mrb[0].mxu0 %v390
    %v426 = vpop.f32.mrb[0].mxu0
    %v427 = vadd.f32 0.0, %v426
    %v428 = vpop.f32.mrb[0].mxu0
    %v429 = vpop.f32.mrb[0].mxu0
    %v430 = vpop.f32.mrb[0].mxu0
    %431 = vdwg.mxu0
    %v432 = vld [vmem:[%s9] sm:$0xf]
    %v433 = vld [vmem:[%s9 + $0x4] sm:$0xf]
    %v436 = vunpack.c.l.b16 %v432
    %v437 = vunpack.c.l.b16 %v433
    %v438 = vpack.c.b16 %v437, %v436
    %440 = vmatprep.subr.bf16.mxu0 0
    %441 = vmatpush1.bf16.msra.mxu0 %v438
    %442 = vmatprep.subr.bf16.mxu0 0
    %443 = vmatpush1.bf16.msra.mxu0 0
    %444 = vmatprep.subr.bf16.mxu0 0
    %445 = vmatpush1.bf16.msra.mxu0 0
    %446 = vmatprep.subr.bf16.mxu0 0
    %447 = vmatpush1.bf16.msra.mxu0 0
    %448 = vmatprep.subr.bf16.mxu0 0
    %449 = vmatpush1.bf16.msra.mxu0 0
    %450 = vmatprep.subr.bf16.mxu0 0
    %451 = vmatpush1.bf16.msra.mxu0 0
    %452 = vmatprep.subr.bf16.mxu0 0
    %453 = vmatpush1.bf16.msra.mxu0 0
    %454 = vmatprep.subr.bf16.mxu0 0
    %455 = vmatpush1.bf16.msra.mxu0 0
    %456 = vmatprep.subr.bf16.mxu0 0
    %457 = vmatpush1.bf16.msra.mxu0 0
    %458 = vmatprep.subr.bf16.mxu0 0
    %459 = vmatpush1.bf16.msra.mxu0 0
    %460 = vmatprep.subr.bf16.mxu0 0
    %461 = vmatpush1.bf16.msra.mxu0 0
    %462 = vmatprep.subr.bf16.mxu0 0
    %463 = vmatpush1.bf16.msra.mxu0 0
    %464 = vmatprep.subr.bf16.mxu0 0
    %465 = vmatpush1.bf16.msra.mxu0 0
    %466 = vmatprep.subr.bf16.mxu0 0
    %467 = vmatpush1.bf16.msra.mxu0 0
    %468 = vmatprep.subr.bf16.mxu0 0
    %469 = vmatpush1.bf16.msra.mxu0 0
    %470 = vmatprep.subr.bf16.mxu0 0
    %471 = vmatpush1.bf16.msra.mxu0 0
    %472 = vmatprep.mubr.bf16.mxu0 0
    %473 = vmatmul.mubr.bf16.gmra.mrb[0].mxu0 %v390
    %v474 = vpop.f32.mrb[0].mxu0
    %v475 = vadd.f32 0.0, %v474
    %v476 = vpop.f32.mrb[0].mxu0
    %v477 = vpop.f32.mrb[0].mxu0
    %v478 = vpop.f32.mrb[0].mxu0
    %479 = vdwg.mxu0
    %v480 = vmul.f32 %v475, %v295
    %v482 = vsel %vm299, %v475, 0
    %484 = vmatprep.subr.mxu0 0.0
    %485 = vmatpush1.msra.mxu0 %v297
    %486 = vmatprep.subr.mxu0 0.0
    %487 = vmatpush1.msra.mxu0 0.0
    %488 = vmatprep.subr.mxu0 0.0
    %489 = vmatpush1.msra.mxu0 0.0
    %490 = vmatprep.subr.mxu0 0.0
    %491 = vmatpush1.msra.mxu0 0.0
    %492 = vmatprep.subr.mxu0 0.0
    %493 = vmatpush1.msra.mxu0 0.0
    %494 = vmatprep.subr.mxu0 0.0
    %495 = vmatpush1.msra.mxu0 0.0
    %496 = vmatprep.subr.mxu0 0.0
    %497 = vmatpush1.msra.mxu0 0.0
    %498 = vmatprep.subr.mxu0 0.0
    %499 = vmatpush1.msra.mxu0 0.0
    %500 = vmatprep.subr.mxu0 0.0
    %501 = vmatpush1.msra.mxu0 0.0
    %502 = vmatprep.subr.mxu0 0.0
    %503 = vmatpush1.msra.mxu0 0.0
    %504 = vmatprep.subr.mxu0 0.0
    %505 = vmatpush1.msra.mxu0 0.0
    %506 = vmatprep.subr.mxu0 0.0
    %507 = vmatpush1.msra.mxu0 0.0
    %508 = vmatprep.subr.mxu0 0.0
    %509 = vmatpush1.msra.mxu0 0.0
    %510 = vmatprep.subr.mxu0 0.0
    %511 = vmatpush1.msra.mxu0 0.0
    %512 = vmatprep.subr.mxu0 0.0
    %513 = vmatpush1.msra.mxu0 0.0
    %514 = vmatprep.subr.mxu0 0.0
    %515 = vmatpush1.msra.mxu0 0.0
    %516 = vmatprep.subr.mxu0 0.0
    %517 = vmatpush1.msra.mxu0 0.0
    %518 = vmatprep.subr.mxu0 0.0
    %519 = vmatpush1.msra.mxu0 0.0
    %520 = vmatprep.subr.mxu0 0.0
    %521 = vmatpush1.msra.mxu0 0.0
    %522 = vmatprep.subr.mxu0 0.0
    %523 = vmatpush1.msra.mxu0 0.0
    %524 = vmatprep.subr.mxu0 0.0
    %525 = vmatpush1.msra.mxu0 0.0
    %526 = vmatprep.subr.mxu0 0.0
    %527 = vmatpush1.msra.mxu0 0.0
    %528 = vmatprep.subr.mxu0 0.0
    %529 = vmatpush1.msra.mxu0 0.0
    %530 = vmatprep.subr.mxu0 0.0
    %531 = vmatpush1.msra.mxu0 0.0
    %532 = vmatprep.subr.mxu0 0.0
    %533 = vmatpush1.msra.mxu0 0.0
    %534 = vmatprep.subr.mxu0 0.0
    %535 = vmatpush1.msra.mxu0 0.0
    %536 = vmatprep.subr.mxu0 0.0
    %537 = vmatpush1.msra.mxu0 0.0
    %538 = vmatprep.subr.mxu0 0.0
    %539 = vmatpush1.msra.mxu0 0.0
    %540 = vmatprep.subr.mxu0 0.0
    %541 = vmatpush1.msra.mxu0 0.0
    %542 = vmatprep.subr.mxu0 0.0
    %543 = vmatpush1.msra.mxu0 0.0
    %544 = vmatprep.subr.mxu0 0.0
    %545 = vmatpush1.msra.mxu0 0.0
    %546 = vmatprep.subr.mxu0 0.0
    %547 = vmatpush1.msra.mxu0 0.0
    %548 = vmatprep.mubr.f32.mxu0 0.0
    %549 = vmatmul.mubr.f32.gmra.mrb[0].mxu0 %v482
    %v550 = vpop.f32.mrb[0].mxu0
    %v551 = vadd.f32 0.0, %v550
    %v552 = vpop.f32.mrb[0].mxu0
    %553 = vdwg.mxu0
    %v554 = vmul.f32 %v551, %v296
    %v555 = vadd.f32 %v480, %v554
    %v556 = vld [vmem:[%s13] sm:$0xf]
    %v557 = vld [vmem:[%s13 + $0x4] sm:$0xf]
    %v558 = vpack.c.bf16 %v238, %v238
    %v561 = vunpack.c.l.b16 %v556
    %v562 = vunpack.c.l.b16 %v557
    %v563 = vpack.c.b16 %v562, %v561
    %v566 = vsel %vm150, %v558, 0
    %568 = vmatprep.subr.bf16.mxu0 0
    %569 = vmatpush1.bf16.msra.mxu0 %v563
    %570 = vmatprep.subr.bf16.mxu0 0
    %571 = vmatpush1.bf16.msra.mxu0 0
    %572 = vmatprep.subr.bf16.mxu0 0
    %573 = vmatpush1.bf16.msra.mxu0 0
    %574 = vmatprep.subr.bf16.mxu0 0
    %575 = vmatpush1.bf16.msra.mxu0 0
    %576 = vmatprep.subr.bf16.mxu0 0
    %577 = vmatpush1.bf16.msra.mxu0 0
    %578 = vmatprep.subr.bf16.mxu0 0
    %579 = vmatpush1.bf16.msra.mxu0 0
    %580 = vmatprep.subr.bf16.mxu0 0
    %581 = vmatpush1.bf16.msra.mxu0 0
    %582 = vmatprep.subr.bf16.mxu0 0
    %583 = vmatpush1.bf16.msra.mxu0 0
    %584 = vmatprep.subr.bf16.mxu0 0
    %585 = vmatpush1.bf16.msra.mxu0 0
    %586 = vmatprep.subr.bf16.mxu0 0
    %587 = vmatpush1.bf16.msra.mxu0 0
    %588 = vmatprep.subr.bf16.mxu0 0
    %589 = vmatpush1.bf16.msra.mxu0 0
    %590 = vmatprep.subr.bf16.mxu0 0
    %591 = vmatpush1.bf16.msra.mxu0 0
    %592 = vmatprep.subr.bf16.mxu0 0
    %593 = vmatpush1.bf16.msra.mxu0 0
    %594 = vmatprep.subr.bf16.mxu0 0
    %595 = vmatpush1.bf16.msra.mxu0 0
    %596 = vmatprep.subr.bf16.mxu0 0
    %597 = vmatpush1.bf16.msra.mxu0 0
    %598 = vmatprep.subr.bf16.mxu0 0
    %599 = vmatpush1.bf16.msra.mxu0 0
    %600 = vmatprep.mubr.bf16.mxu0 0
    %601 = vmatmul.mubr.bf16.gmra.mrb[0].mxu0 %v566
    %v602 = vpop.f32.mrb[0].mxu0
    %v603 = vadd.f32 0.0, %v602
    %v604 = vpop.f32.mrb[0].mxu0
    %v605 = vpop.f32.mrb[0].mxu0
    %v606 = vpop.f32.mrb[0].mxu0
    %607 = vdwg.mxu0
    %v608 = vld [vmem:[%s14] sm:$0xf]
    %v609 = vld [vmem:[%s14 + $0x4] sm:$0xf]
    %v612 = vunpack.c.l.b16 %v608
    %v613 = vunpack.c.l.b16 %v609
    %v614 = vpack.c.b16 %v613, %v612
    %616 = vmatprep.subr.bf16.mxu0 0
    %617 = vmatpush1.bf16.msra.mxu0 %v614
    %618 = vmatprep.subr.bf16.mxu0 0
    %619 = vmatpush1.bf16.msra.mxu0 0
    %620 = vmatprep.subr.bf16.mxu0 0
    %621 = vmatpush1.bf16.msra.mxu0 0
    %622 = vmatprep.subr.bf16.mxu0 0
    %623 = vmatpush1.bf16.msra.mxu0 0
    %624 = vmatprep.subr.bf16.mxu0 0
    %625 = vmatpush1.bf16.msra.mxu0 0
    %626 = vmatprep.subr.bf16.mxu0 0
    %627 = vmatpush1.bf16.msra.mxu0 0
    %628 = vmatprep.subr.bf16.mxu0 0
    %629 = vmatpush1.bf16.msra.mxu0 0
    %630 = vmatprep.subr.bf16.mxu0 0
    %631 = vmatpush1.bf16.msra.mxu0 0
    %632 = vmatprep.subr.bf16.mxu0 0
    %633 = vmatpush1.bf16.msra.mxu0 0
    %634 = vmatprep.subr.bf16.mxu0 0
    %635 = vmatpush1.bf16.msra.mxu0 0
    %636 = vmatprep.subr.bf16.mxu0 0
    %637 = vmatpush1.bf16.msra.mxu0 0
    %638 = vmatprep.subr.bf16.mxu0 0
    %639 = vmatpush1.bf16.msra.mxu0 0
    %640 = vmatprep.subr.bf16.mxu0 0
    %641 = vmatpush1.bf16.msra.mxu0 0
    %642 = vmatprep.subr.bf16.mxu0 0
    %643 = vmatpush1.bf16.msra.mxu0 0
    %644 = vmatprep.subr.bf16.mxu0 0
    %645 = vmatpush1.bf16.msra.mxu0 0
    %646 = vmatprep.subr.bf16.mxu0 0
    %647 = vmatpush1.bf16.msra.mxu0 0
    %648 = vmatprep.mubr.bf16.mxu0 0
    %649 = vmatmul.mubr.bf16.gmra.mrb[0].mxu0 %v566
    %v650 = vpop.f32.mrb[0].mxu0
    %v651 = vadd.f32 0.0, %v650
    %v652 = vpop.f32.mrb[0].mxu0
    %v653 = vpop.f32.mrb[0].mxu0
    %v654 = vpop.f32.mrb[0].mxu0
    %655 = vdwg.mxu0
    %v656 = vpack.c.bf16 %v427, %v427
    %v657 = vpack.c.bf16 %v603, %v603
    %v658 = vpack.c.bf16 %v555, %v555
    %v659 = vpack.c.bf16 %v374, %v374
    %v661 = vsel %vm299, %v658, 0
    %v664 = vsel %vm299, %v659, 0
    %666 = vmatprep.subr.bf16.mxu0 0
    %667 = vmatpush1.bf16.xpose.msra.mxu0 %v664
    %668 = vmatprep.subr.bf16.mxu0 0
    %669 = vmatpush1.bf16.xpose.msra.mxu0 0
    %670 = vmatprep.subr.bf16.mxu0 0
    %671 = vmatpush1.bf16.xpose.msra.mxu0 0
    %672 = vmatprep.subr.bf16.mxu0 0
    %673 = vmatpush1.bf16.xpose.msra.mxu0 0
    %674 = vmatprep.subr.bf16.mxu0 0
    %675 = vmatpush1.bf16.xpose.msra.mxu0 0
    %676 = vmatprep.subr.bf16.mxu0 0
    %677 = vmatpush1.bf16.xpose.msra.mxu0 0
    %678 = vmatprep.subr.bf16.mxu0 0
    %679 = vmatpush1.bf16.xpose.msra.mxu0 0
    %680 = vmatprep.subr.bf16.mxu0 0
    %681 = vmatpush1.bf16.xpose.msra.mxu0 0
    %682 = vmatprep.subr.bf16.mxu0 0
    %683 = vmatpush1.bf16.xpose.msra.mxu0 0
    %684 = vmatprep.subr.bf16.mxu0 0
    %685 = vmatpush1.bf16.xpose.msra.mxu0 0
    %686 = vmatprep.subr.bf16.mxu0 0
    %687 = vmatpush1.bf16.xpose.msra.mxu0 0
    %688 = vmatprep.subr.bf16.mxu0 0
    %689 = vmatpush1.bf16.xpose.msra.mxu0 0
    %690 = vmatprep.subr.bf16.mxu0 0
    %691 = vmatpush1.bf16.xpose.msra.mxu0 0
    %692 = vmatprep.subr.bf16.mxu0 0
    %693 = vmatpush1.bf16.xpose.msra.mxu0 0
    %694 = vmatprep.subr.bf16.mxu0 0
    %695 = vmatpush1.bf16.xpose.msra.mxu0 0
    %696 = vmatprep.subr.bf16.mxu0 0
    %697 = vmatpush1.bf16.xpose.msra.mxu0 0
    %698 = vmatprep.mubr.bf16.mxu0 0
    %699 = vmatmul.mubr.bf16.gmra.mrb[0].mxu0 %v661
    %v700 = vpop.f32.mrb[0].mxu0
    %v701 = vadd.f32 0.0, %v700
    %v702 = vpop.f32.mrb[0].mxu0
    %v703 = vpop.f32.mrb[0].mxu0
    %v704 = vpop.f32.mrb[0].mxu0
    %705 = vdwg.mxu0
    %v707 = vsel %vm150, %v656, 0
    %v710 = vsel %vm150, %v657, 0
    %712 = vmatprep.subr.bf16.mxu0 0
    %713 = vmatpush1.bf16.xpose.msra.mxu0 %v710
    %714 = vmatprep.subr.bf16.mxu0 0
    %715 = vmatpush1.bf16.xpose.msra.mxu0 0
    %716 = vmatprep.subr.bf16.mxu0 0
    %717 = vmatpush1.bf16.xpose.msra.mxu0 0
    %718 = vmatprep.subr.bf16.mxu0 0
    %719 = vmatpush1.bf16.xpose.msra.mxu0 0
    %720 = vmatprep.subr.bf16.mxu0 0
    %721 = vmatpush1.bf16.xpose.msra.mxu0 0
    %722 = vmatprep.subr.bf16.mxu0 0
    %723 = vmatpush1.bf16.xpose.msra.mxu0 0
    %724 = vmatprep.subr.bf16.mxu0 0
    %725 = vmatpush1.bf16.xpose.msra.mxu0 0
    %726 = vmatprep.subr.bf16.mxu0 0
    %727 = vmatpush1.bf16.xpose.msra.mxu0 0
    %728 = vmatprep.subr.bf16.mxu0 0
    %729 = vmatpush1.bf16.xpose.msra.mxu0 0
    %730 = vmatprep.subr.bf16.mxu0 0
    %731 = vmatpush1.bf16.xpose.msra.mxu0 0
    %732 = vmatprep.subr.bf16.mxu0 0
    %733 = vmatpush1.bf16.xpose.msra.mxu0 0
    %734 = vmatprep.subr.bf16.mxu0 0
    %735 = vmatpush1.bf16.xpose.msra.mxu0 0
    %736 = vmatprep.subr.bf16.mxu0 0
    %737 = vmatpush1.bf16.xpose.msra.mxu0 0
    %738 = vmatprep.subr.bf16.mxu0 0
    %739 = vmatpush1.bf16.xpose.msra.mxu0 0
    %740 = vmatprep.subr.bf16.mxu0 0
    %741 = vmatpush1.bf16.xpose.msra.mxu0 0
    %742 = vmatprep.subr.bf16.mxu0 0
    %743 = vmatpush1.bf16.xpose.msra.mxu0 0
    %744 = vmatprep.mubr.bf16.mxu0 0
    %745 = vmatmul.mubr.bf16.gmra.mrb[0].mxu0 %v707
    %v746 = vpop.f32.mrb[0].mxu0
    %v747 = vadd.f32 %v701, %v746
    %v748 = vpop.f32.mrb[0].mxu0
    %v749 = vpop.f32.mrb[0].mxu0
    %v750 = vpop.f32.mrb[0].mxu0
    %751 = vdwg.mxu0
    %v752 = vmul.f32 %v747, 0.20412415
    %v753 = vsel %vm379, %v752, -inf
    %v754 = vsel %vm299, %v753, -inf
    %755 = vmax.xlane.f32.xlu0 %v754
    %v756 = vpop.xlane.xlu0 %755
    %v757 = vsub.f32 %v753, %v756
    %v758 = vmul.f32 %v757, 1.442695
    %v759 = vpow.pop %v758
    %v760 = vsel %vm299, %v759, 0.0
    %761 = vadd.xlane.f32.xlu0 %v760
    %v762 = vpop.xlane.xlu0 %761
    %v763 = vrcp.pop %v762
    %v764 = vmul.f32 %v759, %v763
    %v765 = vpack.c.bf16 %v764, %v764
    %v766 = vpack.c.bf16 %v651, %v651
    %v768 = vsel %vm299, %v765, 0
    %vm770 = vcmask 1043456
    %v772 = vsel %vm770, %v766, 0
    %774 = vmatprep.subr.bf16.mxu0 0
    %775 = vmatpush1.bf16.msra.mxu0 %v772
    %776 = vmatprep.subr.bf16.mxu0 0
    %777 = vmatpush1.bf16.msra.mxu0 0
    %778 = vmatprep.subr.bf16.mxu0 0
    %779 = vmatpush1.bf16.msra.mxu0 0
    %780 = vmatprep.subr.bf16.mxu0 0
    %781 = vmatpush1.bf16.msra.mxu0 0
    %782 = vmatprep.subr.bf16.mxu0 0
    %783 = vmatpush1.bf16.msra.mxu0 0
    %784 = vmatprep.subr.bf16.mxu0 0
    %785 = vmatpush1.bf16.msra.mxu0 0
    %786 = vmatprep.subr.bf16.mxu0 0
    %787 = vmatpush1.bf16.msra.mxu0 0
    %788 = vmatprep.subr.bf16.mxu0 0
    %789 = vmatpush1.bf16.msra.mxu0 0
    %790 = vmatprep.subr.bf16.mxu0 0
    %791 = vmatpush1.bf16.msra.mxu0 0
    %792 = vmatprep.subr.bf16.mxu0 0
    %793 = vmatpush1.bf16.msra.mxu0 0
    %794 = vmatprep.subr.bf16.mxu0 0
    %795 = vmatpush1.bf16.msra.mxu0 0
    %796 = vmatprep.subr.bf16.mxu0 0
    %797 = vmatpush1.bf16.msra.mxu0 0
    %798 = vmatprep.subr.bf16.mxu0 0
    %799 = vmatpush1.bf16.msra.mxu0 0
    %800 = vmatprep.subr.bf16.mxu0 0
    %801 = vmatpush1.bf16.msra.mxu0 0
    %802 = vmatprep.subr.bf16.mxu0 0
    %803 = vmatpush1.bf16.msra.mxu0 0
    %804 = vmatprep.subr.bf16.mxu0 0
    %805 = vmatpush1.bf16.msra.mxu0 0
    %806 = vmatprep.mubr.bf16.mxu0 0
    %807 = vmatmul.mubr.bf16.gmra.mrb[0].mxu0 %v768
    %v808 = vpop.f32.mrb[0].mxu0
    %v809 = vadd.f32 0.0, %v808
    %v810 = vpop.f32.mrb[0].mxu0
    %v811 = vpop.f32.mrb[0].mxu0
    %v812 = vpop.f32.mrb[0].mxu0
    %813 = vdwg.mxu0
    %v814 = vld [vmem:[%s15] sm:$0xf]
    %v815 = vld [vmem:[%s15 + $0x4] sm:$0xf]
    %v816 = vpack.c.bf16 %v809, %v809
    %s817 = scalar_lea.vmem %s8, 8
    %v818 = vld [vmem:[%s817] sm:$0xf]
    %v819 = vld [vmem:[%s817 + $0x4] sm:$0xf]
    %v822 = vunpack.c.l.b16 %v818
    %v823 = vunpack.c.l.b16 %v819
    %v824 = vpack.c.b16 %v823, %v822
    %826 = vmatprep.subr.bf16.mxu0 0
    %827 = vmatpush1.bf16.msra.mxu0 %v824
    %828 = vmatprep.subr.bf16.mxu0 0
    %829 = vmatpush1.bf16.msra.mxu0 0
    %830 = vmatprep.subr.bf16.mxu0 0
    %831 = vmatpush1.bf16.msra.mxu0 0
    %832 = vmatprep.subr.bf16.mxu0 0
    %833 = vmatpush1.bf16.msra.mxu0 0
    %834 = vmatprep.subr.bf16.mxu0 0
    %835 = vmatpush1.bf16.msra.mxu0 0
    %836 = vmatprep.subr.bf16.mxu0 0
    %837 = vmatpush1.bf16.msra.mxu0 0
    %838 = vmatprep.subr.bf16.mxu0 0
    %839 = vmatpush1.bf16.msra.mxu0 0
    %840 = vmatprep.subr.bf16.mxu0 0
    %841 = vmatpush1.bf16.msra.mxu0 0
    %842 = vmatprep.subr.bf16.mxu0 0
    %843 = vmatpush1.bf16.msra.mxu0 0
    %844 = vmatprep.subr.bf16.mxu0 0
    %845 = vmatpush1.bf16.msra.mxu0 0
    %846 = vmatprep.subr.bf16.mxu0 0
    %847 = vmatpush1.bf16.msra.mxu0 0
    %848 = vmatprep.subr.bf16.mxu0 0
    %849 = vmatpush1.bf16.msra.mxu0 0
    %850 = vmatprep.subr.bf16.mxu0 0
    %851 = vmatpush1.bf16.msra.mxu0 0
    %852 = vmatprep.subr.bf16.mxu0 0
    %853 = vmatpush1.bf16.msra.mxu0 0
    %854 = vmatprep.subr.bf16.mxu0 0
    %855 = vmatpush1.bf16.msra.mxu0 0
    %856 = vmatprep.subr.bf16.mxu0 0
    %857 = vmatpush1.bf16.msra.mxu0 0
    %858 = vmatprep.mubr.bf16.mxu0 0
    %859 = vmatmul.mubr.bf16.gmra.mrb[0].mxu0 %v390
    %v860 = vpop.f32.mrb[0].mxu0
    %v861 = vadd.f32 0.0, %v860
    %v862 = vpop.f32.mrb[0].mxu0
    %v863 = vpop.f32.mrb[0].mxu0
    %v864 = vpop.f32.mrb[0].mxu0
    %865 = vdwg.mxu0
    %s866 = scalar_lea.vmem %s9, 8
    %v867 = vld [vmem:[%s866] sm:$0xf]
    %v868 = vld [vmem:[%s866 + $0x4] sm:$0xf]
    %v871 = vunpack.c.l.b16 %v867
    %v872 = vunpack.c.l.b16 %v868
    %v873 = vpack.c.b16 %v872, %v871
    %875 = vmatprep.subr.bf16.mxu0 0
    %876 = vmatpush1.bf16.msra.mxu0 %v873
    %877 = vmatprep.subr.bf16.mxu0 0
    %878 = vmatpush1.bf16.msra.mxu0 0
    %879 = vmatprep.subr.bf16.mxu0 0
    %880 = vmatpush1.bf16.msra.mxu0 0
    %881 = vmatprep.subr.bf16.mxu0 0
    %882 = vmatpush1.bf16.msra.mxu0 0
    %883 = vmatprep.subr.bf16.mxu0 0
    %884 = vmatpush1.bf16.msra.mxu0 0
    %885 = vmatprep.subr.bf16.mxu0 0
    %886 = vmatpush1.bf16.msra.mxu0 0
    %887 = vmatprep.subr.bf16.mxu0 0
    %888 = vmatpush1.bf16.msra.mxu0 0
    %889 = vmatprep.subr.bf16.mxu0 0
    %890 = vmatpush1.bf16.msra.mxu0 0
    %891 = vmatprep.subr.bf16.mxu0 0
    %892 = vmatpush1.bf16.msra.mxu0 0
    %893 = vmatprep.subr.bf16.mxu0 0
    %894 = vmatpush1.bf16.msra.mxu0 0
    %895 = vmatprep.subr.bf16.mxu0 0
    %896 = vmatpush1.bf16.msra.mxu0 0
    %897 = vmatprep.subr.bf16.mxu0 0
    %898 = vmatpush1.bf16.msra.mxu0 0
    %899 = vmatprep.subr.bf16.mxu0 0
    %900 = vmatpush1.bf16.msra.mxu0 0
    %901 = vmatprep.subr.bf16.mxu0 0
    %902 = vmatpush1.bf16.msra.mxu0 0
    %903 = vmatprep.subr.bf16.mxu0 0
    %904 = vmatpush1.bf16.msra.mxu0 0
    %905 = vmatprep.subr.bf16.mxu0 0
    %906 = vmatpush1.bf16.msra.mxu0 0
    %907 = vmatprep.mubr.bf16.mxu0 0
    %908 = vmatmul.mubr.bf16.gmra.mrb[0].mxu0 %v390
    %v909 = vpop.f32.mrb[0].mxu0
    %v910 = vadd.f32 0.0, %v909
    %v911 = vpop.f32.mrb[0].mxu0
    %v912 = vpop.f32.mrb[0].mxu0
    %v913 = vpop.f32.mrb[0].mxu0
    %914 = vdwg.mxu0
    %v915 = vmul.f32 %v910, %v295
    %v917 = vsel %vm299, %v910, 0
    %919 = vmatprep.subr.mxu0 0.0
    %920 = vmatpush1.msra.mxu0 %v297
    %921 = vmatprep.subr.mxu0 0.0
    %922 = vmatpush1.msra.mxu0 0.0
    %923 = vmatprep.subr.mxu0 0.0
    %924 = vmatpush1.msra.mxu0 0.0
    %925 = vmatprep.subr.mxu0 0.0
    %926 = vmatpush1.msra.mxu0 0.0
    %927 = vmatprep.subr.mxu0 0.0
    %928 = vmatpush1.msra.mxu0 0.0
    %929 = vmatprep.subr.mxu0 0.0
    %930 = vmatpush1.msra.mxu0 0.0
    %931 = vmatprep.subr.mxu0 0.0
    %932 = vmatpush1.msra.mxu0 0.0
    %933 = vmatprep.subr.mxu0 0.0
    %934 = vmatpush1.msra.mxu0 0.0
    %935 = vmatprep.subr.mxu0 0.0
    %936 = vmatpush1.msra.mxu0 0.0
    %937 = vmatprep.subr.mxu0 0.0
    %938 = vmatpush1.msra.mxu0 0.0
    %939 = vmatprep.subr.mxu0 0.0
    %940 = vmatpush1.msra.mxu0 0.0
    %941 = vmatprep.subr.mxu0 0.0
    %942 = vmatpush1.msra.mxu0 0.0
    %943 = vmatprep.subr.mxu0 0.0
    %944 = vmatpush1.msra.mxu0 0.0
    %945 = vmatprep.subr.mxu0 0.0
    %946 = vmatpush1.msra.mxu0 0.0
    %947 = vmatprep.subr.mxu0 0.0
    %948 = vmatpush1.msra.mxu0 0.0
    %949 = vmatprep.subr.mxu0 0.0
    %950 = vmatpush1.msra.mxu0 0.0
    %951 = vmatprep.subr.mxu0 0.0
    %952 = vmatpush1.msra.mxu0 0.0
    %953 = vmatprep.subr.mxu0 0.0
    %954 = vmatpush1.msra.mxu0 0.0
    %955 = vmatprep.subr.mxu0 0.0
    %956 = vmatpush1.msra.mxu0 0.0
    %957 = vmatprep.subr.mxu0 0.0
    %958 = vmatpush1.msra.mxu0 0.0
    %959 = vmatprep.subr.mxu0 0.0
    %960 = vmatpush1.msra.mxu0 0.0
    %961 = vmatprep.subr.mxu0 0.0
    %962 = vmatpush1.msra.mxu0 0.0
    %963 = vmatprep.subr.mxu0 0.0
    %964 = vmatpush1.msra.mxu0 0.0
    %965 = vmatprep.subr.mxu0 0.0
    %966 = vmatpush1.msra.mxu0 0.0
    %967 = vmatprep.subr.mxu0 0.0
    %968 = vmatpush1.msra.mxu0 0.0
    %969 = vmatprep.subr.mxu0 0.0
    %970 = vmatpush1.msra.mxu0 0.0
    %971 = vmatprep.subr.mxu0 0.0
    %972 = vmatpush1.msra.mxu0 0.0
    %973 = vmatprep.subr.mxu0 0.0
    %974 = vmatpush1.msra.mxu0 0.0
    %975 = vmatprep.subr.mxu0 0.0
    %976 = vmatpush1.msra.mxu0 0.0
    %977 = vmatprep.subr.mxu0 0.0
    %978 = vmatpush1.msra.mxu0 0.0
    %979 = vmatprep.subr.mxu0 0.0
    %980 = vmatpush1.msra.mxu0 0.0
    %981 = vmatprep.subr.mxu0 0.0
    %982 = vmatpush1.msra.mxu0 0.0
    %983 = vmatprep.mubr.f32.mxu0 0.0
    %984 = vmatmul.mubr.f32.gmra.mrb[0].mxu0 %v917
    %v985 = vpop.f32.mrb[0].mxu0
    %v986 = vadd.f32 0.0, %v985
    %v987 = vpop.f32.mrb[0].mxu0
    %988 = vdwg.mxu0
    %v989 = vmul.f32 %v986, %v296
    %v990 = vadd.f32 %v915, %v989
    %s991 = scalar_lea.vmem %s13, 8
    %v992 = vld [vmem:[%s991] sm:$0xf]
    %v993 = vld [vmem:[%s991 + $0x4] sm:$0xf]
    %v996 = vunpack.c.l.b16 %v992
    %v997 = vunpack.c.l.b16 %v993
    %v998 = vpack.c.b16 %v997, %v996
    %1000 = vmatprep.subr.bf16.mxu0 0
    %1001 = vmatpush1.bf16.msra.mxu0 %v998
    %1002 = vmatprep.subr.bf16.mxu0 0
    %1003 = vmatpush1.bf16.msra.mxu0 0
    %1004 = vmatprep.subr.bf16.mxu0 0
    %1005 = vmatpush1.bf16.msra.mxu0 0
    %1006 = vmatprep.subr.bf16.mxu0 0
    %1007 = vmatpush1.bf16.msra.mxu0 0
    %1008 = vmatprep.subr.bf16.mxu0 0
    %1009 = vmatpush1.bf16.msra.mxu0 0
    %1010 = vmatprep.subr.bf16.mxu0 0
    %1011 = vmatpush1.bf16.msra.mxu0 0
    %1012 = vmatprep.subr.bf16.mxu0 0
    %1013 = vmatpush1.bf16.msra.mxu0 0
    %1014 = vmatprep.subr.bf16.mxu0 0
    %1015 = vmatpush1.bf16.msra.mxu0 0
    %1016 = vmatprep.subr.bf16.mxu0 0
    %1017 = vmatpush1.bf16.msra.mxu0 0
    %1018 = vmatprep.subr.bf16.mxu0 0
    %1019 = vmatpush1.bf16.msra.mxu0 0
    %1020 = vmatprep.subr.bf16.mxu0 0
    %1021 = vmatpush1.bf16.msra.mxu0 0
    %1022 = vmatprep.subr.bf16.mxu0 0
    %1023 = vmatpush1.bf16.msra.mxu0 0
    %1024 = vmatprep.subr.bf16.mxu0 0
    %1025 = vmatpush1.bf16.msra.mxu0 0
    %1026 = vmatprep.subr.bf16.mxu0 0
    %1027 = vmatpush1.bf16.msra.mxu0 0
    %1028 = vmatprep.subr.bf16.mxu0 0
    %1029 = vmatpush1.bf16.msra.mxu0 0
    %1030 = vmatprep.subr.bf16.mxu0 0
    %1031 = vmatpush1.bf16.msra.mxu0 0
    %1032 = vmatprep.mubr.bf16.mxu0 0
    %1033 = vmatmul.mubr.bf16.gmra.mrb[0].mxu0 %v566
    %v1034 = vpop.f32.mrb[0].mxu0
    %v1035 = vadd.f32 0.0, %v1034
    %v1036 = vpop.f32.mrb[0].mxu0
    %v1037 = vpop.f32.mrb[0].mxu0
    %v1038 = vpop.f32.mrb[0].mxu0
    %1039 = vdwg.mxu0
    %s1040 = scalar_lea.vmem %s14, 8
    %v1041 = vld [vmem:[%s1040] sm:$0xf]
    %v1042 = vld [vmem:[%s1040 + $0x4] sm:$0xf]
    %v1045 = vunpack.c.l.b16 %v1041
    %v1046 = vunpack.c.l.b16 %v1042
    %v1047 = vpack.c.b16 %v1046, %v1045
    %1049 = vmatprep.subr.bf16.mxu0 0
    %1050 = vmatpush1.bf16.msra.mxu0 %v1047
    %1051 = vmatprep.subr.bf16.mxu0 0
    %1052 = vmatpush1.bf16.msra.mxu0 0
    %1053 = vmatprep.subr.bf16.mxu0 0
    %1054 = vmatpush1.bf16.msra.mxu0 0
    %1055 = vmatprep.subr.bf16.mxu0 0
    %1056 = vmatpush1.bf16.msra.mxu0 0
    %1057 = vmatprep.subr.bf16.mxu0 0
    %1058 = vmatpush1.bf16.msra.mxu0 0
    %1059 = vmatprep.subr.bf16.mxu0 0
    %1060 = vmatpush1.bf16.msra.mxu0 0
    %1061 = vmatprep.subr.bf16.mxu0 0
    %1062 = vmatpush1.bf16.msra.mxu0 0
    %1063 = vmatprep.subr.bf16.mxu0 0
    %1064 = vmatpush1.bf16.msra.mxu0 0
    %1065 = vmatprep.subr.bf16.mxu0 0
    %1066 = vmatpush1.bf16.msra.mxu0 0
    %1067 = vmatprep.subr.bf16.mxu0 0
    %1068 = vmatpush1.bf16.msra.mxu0 0
    %1069 = vmatprep.subr.bf16.mxu0 0
    %1070 = vmatpush1.bf16.msra.mxu0 0
    %1071 = vmatprep.subr.bf16.mxu0 0
    %1072 = vmatpush1.bf16.msra.mxu0 0
    %1073 = vmatprep.subr.bf16.mxu0 0
    %1074 = vmatpush1.bf16.msra.mxu0 0
    %1075 = vmatprep.subr.bf16.mxu0 0
    %1076 = vmatpush1.bf16.msra.mxu0 0
    %1077 = vmatprep.subr.bf16.mxu0 0
    %1078 = vmatpush1.bf16.msra.mxu0 0
    %1079 = vmatprep.subr.bf16.mxu0 0
    %1080 = vmatpush1.bf16.msra.mxu0 0
    %1081 = vmatprep.mubr.bf16.mxu0 0
    %1082 = vmatmul.mubr.bf16.gmra.mrb[0].mxu0 %v566
    %v1083 = vpop.f32.mrb[0].mxu0
    %v1084 = vadd.f32 0.0, %v1083
    %v1085 = vpop.f32.mrb[0].mxu0
    %v1086 = vpop.f32.mrb[0].mxu0
    %v1087 = vpop.f32.mrb[0].mxu0
    %1088 = vdwg.mxu0
    %v1089 = vpack.c.bf16 %v861, %v861
    %v1090 = vpack.c.bf16 %v1035, %v1035
    %v1091 = vpack.c.bf16 %v990, %v990
    %v1093 = vsel %vm299, %v1091, 0
    %1095 = vmatprep.subr.bf16.mxu0 0
    %1096 = vmatpush1.bf16.xpose.msra.mxu0 %v664
    %1097 = vmatprep.subr.bf16.mxu0 0
    %1098 = vmatpush1.bf16.xpose.msra.mxu0 0
    %1099 = vmatprep.subr.bf16.mxu0 0
    %1100 = vmatpush1.bf16.xpose.msra.mxu0 0
    %1101 = vmatprep.subr.bf16.mxu0 0
    %1102 = vmatpush1.bf16.xpose.msra.mxu0 0
    %1103 = vmatprep.subr.bf16.mxu0 0
    %1104 = vmatpush1.bf16.xpose.msra.mxu0 0
    %1105 = vmatprep.subr.bf16.mxu0 0
    %1106 = vmatpush1.bf16.xpose.msra.mxu0 0
    %1107 = vmatprep.subr.bf16.mxu0 0
    %1108 = vmatpush1.bf16.xpose.msra.mxu0 0
    %1109 = vmatprep.subr.bf16.mxu0 0
    %1110 = vmatpush1.bf16.xpose.msra.mxu0 0
    %1111 = vmatprep.subr.bf16.mxu0 0
    %1112 = vmatpush1.bf16.xpose.msra.mxu0 0
    %1113 = vmatprep.subr.bf16.mxu0 0
    %1114 = vmatpush1.bf16.xpose.msra.mxu0 0
    %1115 = vmatprep.subr.bf16.mxu0 0
    %1116 = vmatpush1.bf16.xpose.msra.mxu0 0
    %1117 = vmatprep.subr.bf16.mxu0 0
    %1118 = vmatpush1.bf16.xpose.msra.mxu0 0
    %1119 = vmatprep.subr.bf16.mxu0 0
    %1120 = vmatpush1.bf16.xpose.msra.mxu0 0
    %1121 = vmatprep.subr.bf16.mxu0 0
    %1122 = vmatpush1.bf16.xpose.msra.mxu0 0
    %1123 = vmatprep.subr.bf16.mxu0 0
    %1124 = vmatpush1.bf16.xpose.msra.mxu0 0
    %1125 = vmatprep.subr.bf16.mxu0 0
    %1126 = vmatpush1.bf16.xpose.msra.mxu0 0
    %1127 = vmatprep.mubr.bf16.mxu0 0
    %1128 = vmatmul.mubr.bf16.gmra.mrb[0].mxu0 %v1093
    %v1129 = vpop.f32.mrb[0].mxu0
    %v1130 = vadd.f32 0.0, %v1129
    %v1131 = vpop.f32.mrb[0].mxu0
    %v1132 = vpop.f32.mrb[0].mxu0
    %v1133 = vpop.f32.mrb[0].mxu0
    %1134 = vdwg.mxu0
    %v1136 = vsel %vm150, %v1089, 0
    %v1139 = vsel %vm150, %v1090, 0
    %1141 = vmatprep.subr.bf16.mxu0 0
    %1142 = vmatpush1.bf16.xpose.msra.mxu0 %v1139
    %1143 = vmatprep.subr.bf16.mxu0 0
    %1144 = vmatpush1.bf16.xpose.msra.mxu0 0
    %1145 = vmatprep.subr.bf16.mxu0 0
    %1146 = vmatpush1.bf16.xpose.msra.mxu0 0
    %1147 = vmatprep.subr.bf16.mxu0 0
    %1148 = vmatpush1.bf16.xpose.msra.mxu0 0
    %1149 = vmatprep.subr.bf16.mxu0 0
    %1150 = vmatpush1.bf16.xpose.msra.mxu0 0
    %1151 = vmatprep.subr.bf16.mxu0 0
    %1152 = vmatpush1.bf16.xpose.msra.mxu0 0
    %1153 = vmatprep.subr.bf16.mxu0 0
    %1154 = vmatpush1.bf16.xpose.msra.mxu0 0
    %1155 = vmatprep.subr.bf16.mxu0 0
    %1156 = vmatpush1.bf16.xpose.msra.mxu0 0
    %1157 = vmatprep.subr.bf16.mxu0 0
    %1158 = vmatpush1.bf16.xpose.msra.mxu0 0
    %1159 = vmatprep.subr.bf16.mxu0 0
    %1160 = vmatpush1.bf16.xpose.msra.mxu0 0
    %1161 = vmatprep.subr.bf16.mxu0 0
    %1162 = vmatpush1.bf16.xpose.msra.mxu0 0
    %1163 = vmatprep.subr.bf16.mxu0 0
    %1164 = vmatpush1.bf16.xpose.msra.mxu0 0
    %1165 = vmatprep.subr.bf16.mxu0 0
    %1166 = vmatpush1.bf16.xpose.msra.mxu0 0
    %1167 = vmatprep.subr.bf16.mxu0 0
    %1168 = vmatpush1.bf16.xpose.msra.mxu0 0
    %1169 = vmatprep.subr.bf16.mxu0 0
    %1170 = vmatpush1.bf16.xpose.msra.mxu0 0
    %1171 = vmatprep.subr.bf16.mxu0 0
    %1172 = vmatpush1.bf16.xpose.msra.mxu0 0
    %1173 = vmatprep.mubr.bf16.mxu0 0
    %1174 = vmatmul.mubr.bf16.gmra.mrb[0].mxu0 %v1136
    %v1175 = vpop.f32.mrb[0].mxu0
    %v1176 = vadd.f32 %v1130, %v1175
    %v1177 = vpop.f32.mrb[0].mxu0
    %v1178 = vpop.f32.mrb[0].mxu0
    %v1179 = vpop.f32.mrb[0].mxu0
    %1180 = vdwg.mxu0
    %v1181 = vmul.f32 %v1176, 0.20412415
    %v1182 = vsel %vm379, %v1181, -inf
    %v1183 = vsel %vm299, %v1182, -inf
    %1184 = vmax.xlane.f32.xlu0 %v1183
    %v1185 = vpop.xlane.xlu0 %1184
    %v1186 = vsub.f32 %v1182, %v1185
    %v1187 = vmul.f32 %v1186, 1.442695
    %v1188 = vpow.pop %v1187
    %v1189 = vsel %vm299, %v1188, 0.0
    %1190 = vadd.xlane.f32.xlu0 %v1189
    %v1191 = vpop.xlane.xlu0 %1190
    %v1192 = vrcp.pop %v1191
    %v1193 = vmul.f32 %v1188, %v1192
    %v1194 = vpack.c.bf16 %v1193, %v1193
    %v1195 = vpack.c.bf16 %v1084, %v1084
    %v1197 = vsel %vm299, %v1194, 0
    %v1200 = vsel %vm770, %v1195, 0
    %1202 = vmatprep.subr.bf16.mxu0 0
    %1203 = vmatpush1.bf16.msra.mxu0 %v1200
    %1204 = vmatprep.subr.bf16.mxu0 0
    %1205 = vmatpush1.bf16.msra.mxu0 0
    %1206 = vmatprep.subr.bf16.mxu0 0
    %1207 = vmatpush1.bf16.msra.mxu0 0
    %1208 = vmatprep.subr.bf16.mxu0 0
    %1209 = vmatpush1.bf16.msra.mxu0 0
    %1210 = vmatprep.subr.bf16.mxu0 0
    %1211 = vmatpush1.bf16.msra.mxu0 0
    %1212 = vmatprep.subr.bf16.mxu0 0
    %1213 = vmatpush1.bf16.msra.mxu0 0
    %1214 = vmatprep.subr.bf16.mxu0 0
    %1215 = vmatpush1.bf16.msra.mxu0 0
    %1216 = vmatprep.subr.bf16.mxu0 0
    %1217 = vmatpush1.bf16.msra.mxu0 0
    %1218 = vmatprep.subr.bf16.mxu0 0
    %1219 = vmatpush1.bf16.msra.mxu0 0
    %1220 = vmatprep.subr.bf16.mxu0 0
    %1221 = vmatpush1.bf16.msra.mxu0 0
    %1222 = vmatprep.subr.bf16.mxu0 0
    %1223 = vmatpush1.bf16.msra.mxu0 0
    %1224 = vmatprep.subr.bf16.mxu0 0
    %1225 = vmatpush1.bf16.msra.mxu0 0
    %1226 = vmatprep.subr.bf16.mxu0 0
    %1227 = vmatpush1.bf16.msra.mxu0 0
    %1228 = vmatprep.subr.bf16.mxu0 0
    %1229 = vmatpush1.bf16.msra.mxu0 0
    %1230 = vmatprep.subr.bf16.mxu0 0
    %1231 = vmatpush1.bf16.msra.mxu0 0
    %1232 = vmatprep.subr.bf16.mxu0 0
    %1233 = vmatpush1.bf16.msra.mxu0 0
    %1234 = vmatprep.mubr.bf16.mxu0 0
    %1235 = vmatmul.mubr.bf16.gmra.mrb[0].mxu0 %v1197
    %v1236 = vpop.f32.mrb[0].mxu0
    %v1237 = vadd.f32 0.0, %v1236
    %v1238 = vpop.f32.mrb[0].mxu0
    %v1239 = vpop.f32.mrb[0].mxu0
    %v1240 = vpop.f32.mrb[0].mxu0
    %1241 = vdwg.mxu0
    %s1242 = scalar_lea.vmem %s15, 8
    %v1243 = vld [vmem:[%s1242] sm:$0xf]
    %v1244 = vld [vmem:[%s1242 + $0x4] sm:$0xf]
    %v1245 = vpack.c.bf16 %v1237, %v1237
    %v1248 = vunpack.c.l.b16 %v1243
    %v1249 = vunpack.c.l.b16 %v1244
    %v1250 = vpack.c.b16 %v1249, %v1248
    %v1253 = vsel %vm150, %v1245, 0
    %1255 = vmatprep.subr.bf16.mxu0 0
    %1256 = vmatpush1.bf16.msra.mxu0 %v1250
    %1257 = vmatprep.subr.bf16.mxu0 0
    %1258 = vmatpush1.bf16.msra.mxu0 0
    %1259 = vmatprep.subr.bf16.mxu0 0
    %1260 = vmatpush1.bf16.msra.mxu0 0
    %1261 = vmatprep.subr.bf16.mxu0 0
    %1262 = vmatpush1.bf16.msra.mxu0 0
    %1263 = vmatprep.subr.bf16.mxu0 0
    %1264 = vmatpush1.bf16.msra.mxu0 0
    %1265 = vmatprep.subr.bf16.mxu0 0
    %1266 = vmatpush1.bf16.msra.mxu0 0
    %1267 = vmatprep.subr.bf16.mxu0 0
    %1268 = vmatpush1.bf16.msra.mxu0 0
    %1269 = vmatprep.subr.bf16.mxu0 0
    %1270 = vmatpush1.bf16.msra.mxu0 0
    %1271 = vmatprep.subr.bf16.mxu0 0
    %1272 = vmatpush1.bf16.msra.mxu0 0
    %1273 = vmatprep.subr.bf16.mxu0 0
    %1274 = vmatpush1.bf16.msra.mxu0 0
    %1275 = vmatprep.subr.bf16.mxu0 0
    %1276 = vmatpush1.bf16.msra.mxu0 0
    %1277 = vmatprep.subr.bf16.mxu0 0
    %1278 = vmatpush1.bf16.msra.mxu0 0
    %1279 = vmatprep.subr.bf16.mxu0 0
    %1280 = vmatpush1.bf16.msra.mxu0 0
    %1281 = vmatprep.subr.bf16.mxu0 0
    %1282 = vmatpush1.bf16.msra.mxu0 0
    %1283 = vmatprep.subr.bf16.mxu0 0
    %1284 = vmatpush1.bf16.msra.mxu0 0
    %1285 = vmatprep.subr.bf16.mxu0 0
    %1286 = vmatpush1.bf16.msra.mxu0 0
    %1287 = vmatprep.mubr.bf16.mxu0 0
    %1288 = vmatmul.mubr.bf16.gmra.mrb[0].mxu0 %v1253
    %v1289 = vpop.f32.mrb[0].mxu0
    %v1290 = vadd.f32 0.0, %v1289
    %v1291 = vpop.f32.mrb[0].mxu0
    %v1292 = vpop.f32.mrb[0].mxu0
    %v1293 = vpop.f32.mrb[0].mxu0
    %1294 = vdwg.mxu0
    %v1297 = vunpack.c.l.b16 %v814
    %v1298 = vunpack.c.l.b16 %v815
    %v1299 = vpack.c.b16 %v1298, %v1297
    %v1302 = vsel %vm150, %v816, 0
    %1304 = vmatprep.subr.bf16.mxu0 0
    %1305 = vmatpush1.bf16.msra.mxu0 %v1299
    %1306 = vmatprep.subr.bf16.mxu0 0
    %1307 = vmatpush1.bf16.msra.mxu0 0
    %1308 = vmatprep.subr.bf16.mxu0 0
    %1309 = vmatpush1.bf16.msra.mxu0 0
    %1310 = vmatprep.subr.bf16.mxu0 0
    %1311 = vmatpush1.bf16.msra.mxu0 0
    %1312 = vmatprep.subr.bf16.mxu0 0
    %1313 = vmatpush1.bf16.msra.mxu0 0
    %1314 = vmatprep.subr.bf16.mxu0 0
    %1315 = vmatpush1.bf16.msra.mxu0 0
    %1316 = vmatprep.subr.bf16.mxu0 0
    %1317 = vmatpush1.bf16.msra.mxu0 0
    %1318 = vmatprep.subr.bf16.mxu0 0
    %1319 = vmatpush1.bf16.msra.mxu0 0
    %1320 = vmatprep.subr.bf16.mxu0 0
    %1321 = vmatpush1.bf16.msra.mxu0 0
    %1322 = vmatprep.subr.bf16.mxu0 0
    %1323 = vmatpush1.bf16.msra.mxu0 0
    %1324 = vmatprep.subr.bf16.mxu0 0
    %1325 = vmatpush1.bf16.msra.mxu0 0
    %1326 = vmatprep.subr.bf16.mxu0 0
    %1327 = vmatpush1.bf16.msra.mxu0 0
    %1328 = vmatprep.subr.bf16.mxu0 0
    %1329 = vmatpush1.bf16.msra.mxu0 0
    %1330 = vmatprep.subr.bf16.mxu0 0
    %1331 = vmatpush1.bf16.msra.mxu0 0
    %1332 = vmatprep.subr.bf16.mxu0 0
    %1333 = vmatpush1.bf16.msra.mxu0 0
    %1334 = vmatprep.subr.bf16.mxu0 0
    %1335 = vmatpush1.bf16.msra.mxu0 0
    %1336 = vmatprep.mubr.bf16.mxu0 0
    %1337 = vmatmul.mubr.bf16.gmra.mrb[0].mxu0 %v1302
    %v1338 = vpop.f32.mrb[0].mxu0
    %v1339 = vadd.f32 %v1290, %v1338
    %v1340 = vpop.f32.mrb[0].mxu0
    %v1341 = vpop.f32.mrb[0].mxu0
    %v1342 = vpop.f32.mrb[0].mxu0
    %1343 = vdwg.mxu0
    %v1344 = vadd.f32 %v1339, %v70
    %1345 = vst.msk [vmem:[#allocation4] sm:$0xff] %vm72, %v1344
    %v1346 = vmul.f32 %v1344, %v1344
    %v1347 = vsel %vm72, %v1346, 0.0
    %1348 = vadd.xlane.f32.xlu0 %v1347
    %v1349 = vpop.xlane.xlu0 %1348
    %v1350 = vmul.f32 %v1349, %v76
    %v1351 = vadd.f32 %v1350, 1e-06
    %v1352 = vrsqrt.pop %v1351
    %v1353 = vmul.f32 %v1344, %v1352
    %v1354 = vld [vmem:[%s16] sm:$0x1]
    %v1356 = vlaneseq
    %v1357 = vshrl.u32 %v1356, 7
    %v1358 = vsub.s32 0, %v1357
    %v1359 = vrot.slane %v1354, %v1358
    %v1361 = vmul.f32 %v1353, %v1359
    %v1362 = vld [vmem:[%s17] sm:$0xf]
    %v1363 = vld [vmem:[%s17 + $0x4] sm:$0xf]
    %v1364 = vld [vmem:[%s17 + $0x8] sm:$0xf]
    %v1365 = vld [vmem:[%s17 + $0xc] sm:$0xf]
    %v1366 = vpack.c.bf16 %v1361, %v1361
    %v1371 = vunpack.c.l.b16 %v1362
    %v1372 = vunpack.c.l.b16 %v1363
    %v1373 = vunpack.c.l.b16 %v1364
    %v1374 = vunpack.c.l.b16 %v1365
    %v1375 = vpack.c.b16 %v1372, %v1371
    %v1376 = vpack.c.b16 %v1374, %v1373
    %v1380 = vsel %vm72, %v1366, 0
    %1382 = vmatprep.subr.bf16.mxu0 0
    %1383 = vmatpush1.bf16.msra.mxu0 %v1375
    %1384 = vmatprep.subr.bf16.mxu0 0
    %1385 = vmatpush1.bf16.msra.mxu0 %v1376
    %1386 = vmatprep.subr.bf16.mxu0 0
    %1387 = vmatpush1.bf16.msra.mxu0 0
    %1388 = vmatprep.subr.bf16.mxu0 0
    %1389 = vmatpush1.bf16.msra.mxu0 0
    %1390 = vmatprep.subr.bf16.mxu0 0
    %1391 = vmatpush1.bf16.msra.mxu0 0
    %1392 = vmatprep.subr.bf16.mxu0 0
    %1393 = vmatpush1.bf16.msra.mxu0 0
    %1394 = vmatprep.subr.bf16.mxu0 0
    %1395 = vmatpush1.bf16.msra.mxu0 0
    %1396 = vmatprep.subr.bf16.mxu0 0
    %1397 = vmatpush1.bf16.msra.mxu0 0
    %1398 = vmatprep.subr.bf16.mxu0 0
    %1399 = vmatpush1.bf16.msra.mxu0 0
    %1400 = vmatprep.subr.bf16.mxu0 0
    %1401 = vmatpush1.bf16.msra.mxu0 0
    %1402 = vmatprep.subr.bf16.mxu0 0
    %1403 = vmatpush1.bf16.msra.mxu0 0
    %1404 = vmatprep.subr.bf16.mxu0 0
    %1405 = vmatpush1.bf16.msra.mxu0 0
    %1406 = vmatprep.subr.bf16.mxu0 0
    %1407 = vmatpush1.bf16.msra.mxu0 0
    %1408 = vmatprep.subr.bf16.mxu0 0
    %1409 = vmatpush1.bf16.msra.mxu0 0
    %1410 = vmatprep.subr.bf16.mxu0 0
    %1411 = vmatpush1.bf16.msra.mxu0 0
    %1412 = vmatprep.subr.bf16.mxu0 0
    %1413 = vmatpush1.bf16.msra.mxu0 0
    %1414 = vmatprep.mubr.bf16.mxu0 0
    %1415 = vmatmul.mubr.bf16.gmra.mrb[0].mxu0 %v1380
    %v1416 = vpop.f32.mrb[0].mxu0
    %v1417 = vadd.f32 0.0, %v1416
    %v1418 = vpop.f32.mrb[0].mxu0
    %v1419 = vpop.f32.mrb[0].mxu0
    %v1420 = vpop.f32.mrb[0].mxu0
    %1421 = vdwg.mxu0
    %v1422 = vld [vmem:[%s18] sm:$0xf]
    %v1423 = vld [vmem:[%s18 + $0x4] sm:$0xf]
    %v1424 = vld [vmem:[%s18 + $0x8] sm:$0xf]
    %v1425 = vld [vmem:[%s18 + $0xc] sm:$0xf]
    %v1430 = vunpack.c.l.b16 %v1422
    %v1431 = vunpack.c.l.b16 %v1423
    %v1432 = vunpack.c.l.b16 %v1424
    %v1433 = vunpack.c.l.b16 %v1425
    %v1434 = vpack.c.b16 %v1431, %v1430
    %v1435 = vpack.c.b16 %v1433, %v1432
    %1438 = vmatprep.subr.bf16.mxu0 0
    %1439 = vmatpush1.bf16.msra.mxu0 %v1434
    %1440 = vmatprep.subr.bf16.mxu0 0
    %1441 = vmatpush1.bf16.msra.mxu0 %v1435
    %1442 = vmatprep.subr.bf16.mxu0 0
    %1443 = vmatpush1.bf16.msra.mxu0 0
    %1444 = vmatprep.subr.bf16.mxu0 0
    %1445 = vmatpush1.bf16.msra.mxu0 0
    %1446 = vmatprep.subr.bf16.mxu0 0
    %1447 = vmatpush1.bf16.msra.mxu0 0
    %1448 = vmatprep.subr.bf16.mxu0 0
    %1449 = vmatpush1.bf16.msra.mxu0 0
    %1450 = vmatprep.subr.bf16.mxu0 0
    %1451 = vmatpush1.bf16.msra.mxu0 0
    %1452 = vmatprep.subr.bf16.mxu0 0
    %1453 = vmatpush1.bf16.msra.mxu0 0
    %1454 = vmatprep.subr.bf16.mxu0 0
    %1455 = vmatpush1.bf16.msra.mxu0 0
    %1456 = vmatprep.subr.bf16.mxu0 0
    %1457 = vmatpush1.bf16.msra.mxu0 0
    %1458 = vmatprep.subr.bf16.mxu0 0
    %1459 = vmatpush1.bf16.msra.mxu0 0
    %1460 = vmatprep.subr.bf16.mxu0 0
    %1461 = vmatpush1.bf16.msra.mxu0 0
    %1462 = vmatprep.subr.bf16.mxu0 0
    %1463 = vmatpush1.bf16.msra.mxu0 0
    %1464 = vmatprep.subr.bf16.mxu0 0
    %1465 = vmatpush1.bf16.msra.mxu0 0
    %1466 = vmatprep.subr.bf16.mxu0 0
    %1467 = vmatpush1.bf16.msra.mxu0 0
    %1468 = vmatprep.subr.bf16.mxu0 0
    %1469 = vmatpush1.bf16.msra.mxu0 0
    %1470 = vmatprep.mubr.bf16.mxu0 0
    %1471 = vmatmul.mubr.bf16.gmra.mrb[0].mxu0 %v1380
    %v1472 = vpop.f32.mrb[0].mxu0
    %v1473 = vadd.f32 0.0, %v1472
    %v1474 = vpop.f32.mrb[0].mxu0
    %v1475 = vpop.f32.mrb[0].mxu0
    %v1476 = vpop.f32.mrb[0].mxu0
    %1477 = vdwg.mxu0
    %v1478 = vxor.u32 %v1417, 2147483648
    %v1479 = vmul.f32 %v1478, 1.442695
    %v1480 = vpow.pop %v1479
    %v1481 = vadd.f32 %v1480, 1.0
    %v1482 = vrcp.pop %v1481
    %v1483 = vmul.f32 1.0, %v1482
    %v1484 = vmul.f32 %v1417, %v1483
    %v1485 = vmul.f32 %v1484, %v1473
    %v1486 = vld [vmem:[%s19] sm:$0xf]
    %v1487 = vld [vmem:[%s19 + $0x4] sm:$0xf]
    %v1488 = vld [vmem:[%s19 + $0x8] sm:$0xf]
    %v1489 = vld [vmem:[%s19 + $0xc] sm:$0xf]
    %v1490 = vld [vmem:[%s19 + $0x10] sm:$0xf]
    %v1491 = vld [vmem:[%s19 + $0x14] sm:$0xf]
    %v1492 = vld [vmem:[%s19 + $0x18] sm:$0xf]
    %v1493 = vld [vmem:[%s19 + $0x1c] sm:$0xf]
    %v1494 = vpack.c.bf16 %v1485, %v1485
    %v1503 = vunpack.c.l.b16 %v1486
    %v1504 = vunpack.c.l.b16 %v1487
    %v1505 = vunpack.c.l.b16 %v1488
    %v1506 = vunpack.c.l.b16 %v1489
    %v1507 = vunpack.c.l.b16 %v1490
    %v1508 = vunpack.c.l.b16 %v1491
    %v1509 = vunpack.c.l.b16 %v1492
    %v1510 = vunpack.c.l.b16 %v1493
    %v1511 = vpack.c.b16 %v1504, %v1503
    %v1512 = vpack.c.b16 %v1506, %v1505
    %v1513 = vpack.c.b16 %v1508, %v1507
    %v1514 = vpack.c.b16 %v1510, %v1509
    %vm1519 = vcmask 523264
    %v1521 = vsel %vm1519, %v1494, 0
    %1523 = vmatprep.subr.bf16.mxu0 0
    %1524 = vmatpush1.bf16.msra.mxu0 %v1511
    %1525 = vmatprep.subr.bf16.mxu0 0
    %1526 = vmatpush1.bf16.msra.mxu0 %v1512
    %1527 = vmatprep.subr.bf16.mxu0 0
    %1528 = vmatpush1.bf16.msra.mxu0 %v1513
    %1529 = vmatprep.subr.bf16.mxu0 0
    %1530 = vmatpush1.bf16.msra.mxu0 %v1514
    %1531 = vmatprep.subr.bf16.mxu0 0
    %1532 = vmatpush1.bf16.msra.mxu0 0
    %1533 = vmatprep.subr.bf16.mxu0 0
    %1534 = vmatpush1.bf16.msra.mxu0 0
    %1535 = vmatprep.subr.bf16.mxu0 0
    %1536 = vmatpush1.bf16.msra.mxu0 0
    %1537 = vmatprep.subr.bf16.mxu0 0
    %1538 = vmatpush1.bf16.msra.mxu0 0
    %1539 = vmatprep.subr.bf16.mxu0 0
    %1540 = vmatpush1.bf16.msra.mxu0 0
    %1541 = vmatprep.subr.bf16.mxu0 0
    %1542 = vmatpush1.bf16.msra.mxu0 0
    %1543 = vmatprep.subr.bf16.mxu0 0
    %1544 = vmatpush1.bf16.msra.mxu0 0
    %1545 = vmatprep.subr.bf16.mxu0 0
    %1546 = vmatpush1.bf16.msra.mxu0 0
    %1547 = vmatprep.subr.bf16.mxu0 0
    %1548 = vmatpush1.bf16.msra.mxu0 0
    %1549 = vmatprep.subr.bf16.mxu0 0
    %1550 = vmatpush1.bf16.msra.mxu0 0
    %1551 = vmatprep.subr.bf16.mxu0 0
    %1552 = vmatpush1.bf16.msra.mxu0 0
    %1553 = vmatprep.subr.bf16.mxu0 0
    %1554 = vmatpush1.bf16.msra.mxu0 0
    %1555 = vmatprep.mubr.bf16.mxu0 0
    %1556 = vmatmul.mubr.bf16.gmra.mrb[0].mxu0 %v1521
    %v1557 = vpop.f32.mrb[0].mxu0
    %v1558 = vadd.f32 0.0, %v1557
    %v1559 = vpop.f32.mrb[0].mxu0
    %v1560 = vpop.f32.mrb[0].mxu0
    %v1561 = vpop.f32.mrb[0].mxu0
    %1562 = vdwg.mxu0
    %1563 = vst.msk [vmem:[#allocation2] sm:$0xff] %vm72, %v1558
    // Predicated region
    $region82: #{deepseek_decoder_layer.1} parent=1 // pred_check
      _
    $region83: #{deepseek_decoder_layer.1} parent=1 // pred_check_branch
      %1565 = sbr.rel (0) target = $region85
    $region84: #{deepseek_decoder_layer.1} parent=1 // pred_region
      %s1567 = ssub.s32 128, 128
      %1568 = vsyncadd [#allocation3], %s1567
      %s1570 = sshll.u32 [#allocation2], 4
      %s1571 = int_to_ptr.vmem [resolvable:$true] %s1570
      %1573 = dma.vmem_to_hbm [thread:$0]  %s1571, 128, %s20, [#allocation3]
    $region85: #{deepseek_decoder_layer.1} parent=1 // pred_fallthru
      _
    // Predicated region
    $region86: #{deepseek_decoder_layer.1} parent=1 // pred_check
      _
    $region87: #{deepseek_decoder_layer.1} parent=1 // pred_check_branch
      %1575 = sbr.rel (0) target = $region89
    $region88: #{deepseek_decoder_layer.1} parent=1 // pred_region
      %s1577 = ssub.s32 128, 128
      %1578 = vsyncadd [#allocation5], %s1577
      %s1580 = sshll.u32 [#allocation4], 4
      %s1581 = int_to_ptr.vmem [resolvable:$true] %s1580
      %1583 = dma.vmem_to_hbm [thread:$0]  %s1581, 128, %s21, [#allocation5]
    $region89: #{deepseek_decoder_layer.1} parent=1 // pred_fallthru
      _
    // Predicated region
    $region90: #{deepseek_decoder_layer.1} parent=1 // pred_check
      _
    $region91: #{deepseek_decoder_layer.1} parent=1 // pred_check_branch
      %1585 = sbr.rel (0) target = $region93
    $region92: #{deepseek_decoder_layer.1} parent=1 // pred_region
      %1586 = dma.done [#allocation3], 128
    $region93: #{deepseek_decoder_layer.1} parent=1 // pred_fallthru
      _
    // Predicated region
    $region94: #{deepseek_decoder_layer.1} parent=1 // pred_check
      _
    $region95: #{deepseek_decoder_layer.1} parent=1 // pred_check_branch
      %1588 = sbr.rel (0) target = $region97
    $region96: #{deepseek_decoder_layer.1} parent=1 // pred_region
      %1589 = dma.done [#allocation5], 128
    $region97: #{deepseek_decoder_layer.1} parent=1 // pred_fallthru
      _
    %1590 = vsyncpa [#allocation3], 1
    %1591 = vsyncpa [#allocation5], 1

</llo_original>
